<compile_context>
chip_gen: v7x
topology: tpu7x:2x2x1
jax: 0.10.0
libtpu: 0.0.40
codegen_flags: <defaults>
</compile_context>

<pallas_src>
import functools
import math

import jax
import jax.numpy as jnp
from jax import lax
from jax.experimental import pallas as pl
from jax.experimental.pallas import tpu as pltpu

_LANE = 128
_SINGLE_BUFFER = [True]   # flipped off if this build rejects pl.Buffered(1)


def _round_up(v, m):
    return ((v + m - 1) // m) * m


def _pad_cols(a, width):
    n, c = a.shape
    if c == width:
        return a
    return jnp.pad(a, ((0, 0), (0, width - c)))


def _tpu_vmem_bytes():
    try:
        info = pltpu.get_tpu_info()
        for attr in ("vmem_capacity_bytes", "vmem_bytes", "vmem_size_bytes"):
            v = getattr(info, attr, None)
            if v:
                return int(v)
    except Exception:
        pass
    return 64 * 1024 * 1024          # conservative: v7x per-TensorCore VMEM


def _vmem_params():
    phys = _tpu_vmem_bytes()
    # ~25% headroom below physical: v5e/v6e (128 MiB) -> 96 MiB, v7x -> 48 MiB.
    limit = min(phys * 3 // 4, 100 * 1024 * 1024)
    max_tile = 128 if phys <= 64 * 1024 * 1024 else 512
    return int(limit), max_tile


def _pick_tile(n_pad, fin_p, hfop, vmem_limit, max_tile):
    """Largest dst-row tile (dividing n_pad) whose working set fits VMEM,
    preferring >= 2 grid steps so the 'parallel' axis has work to shard."""
    resident = n_pad * (2 * fin_p + 2 * hfop) + 16 * n_pad + 8 * hfop
    best = 128
    for t in (256, 512):
        if t > max_tile or n_pad % t != 0 or n_pad // t < 2:
            continue
        streamed = 2 * (2 * t * n_pad * 2 + t * (2 * fin_p + 4 * hfop + 16))
        temps = 5 * t * n_pad * 4    # live (tile, N) f32 temporaries
        if resident + streamed + temps <= vmem_limit:
            best = t
    return best


def _resident_spec(shape, single):
    """Spec for an input whose block index never changes (resident slab).

    Single-buffering halves its VMEM footprint: the default pipeline would
    double-buffer a slab that is only ever fetched once."""
    nd = len(shape)

    def idx(i):
        return (0,) * nd

    if single:
        try:
            return pl.BlockSpec(shape, idx, pipeline_mode=pl.Buffered(1))
        except Exception:            # older builds without pipeline_mode
            pass
    return pl.BlockSpec(shape, idx)


def _run_with_fallback(build):
    """Run build(single_buffer=True); retry double-buffered if rejected."""
    if _SINGLE_BUFFER[0]:
        try:
            return build(True)
        except Exception:
            _SINGLE_BUFFER[0] = False
    return build(False)


# --------------------------------------------------------------------------
# fc kernel: z = x @ W (bf16 MXU), fused per-head el / er projections
# --------------------------------------------------------------------------
def fc_kernel(x_ref, w_ref, alpT_ref, arpT_ref, z_ref, el_ref, er_ref):
    z = jnp.dot(x_ref[...], w_ref[...], preferred_element_type=jnp.float32)
    z_bf = z.astype(jnp.bfloat16)
    z_ref[...] = z_bf
    # All heads' attention projections in one MXU push each (packed (hfop, H)).
    el_ref[...] = jnp.dot(z_bf, alpT_ref[...], preferred_element_type=jnp.float32)
    er_ref[...] = jnp.dot(z_bf, arpT_ref[...], preferred_element_type=jnp.float32)


def fc(x_bf, w_bf, alpT, arpT, *, tile, vmem_limit):
    n, fin_p = x_bf.shape
    hfop = w_bf.shape[1]
    heads = alpT.shape[1]
    cost = pl.CostEstimate(
        flops=int(2 * n * fin_p * hfop + 4 * n * hfop * heads),
        transcendentals=0,
        bytes_accessed=int(2 * (n * fin_p + fin_p * hfop + n * hfop)
                           + 8 * n * heads))

    def build(single):
        return pl.pallas_call(
            fc_kernel,
            grid=(n // tile,),
            in_specs=[
                pl.BlockSpec((tile, fin_p), lambda i: (i, 0)),   # x rows (bf16)
                _resident_spec((fin_p, hfop), single),           # W (bf16)
                _resident_spec((hfop, heads), single),           # attn_l packed^T
                _resident_spec((hfop, heads), single),           # attn_r packed^T
            ],
            out_specs=(
                pl.BlockSpec((tile, hfop), lambda i: (i, 0)),    # z (bf16)
                pl.BlockSpec((tile, heads), lambda i: (i, 0)),   # el
                pl.BlockSpec((tile, heads), lambda i: (i, 0)),   # er
            ),
            out_shape=(
                jax.ShapeDtypeStruct((n, hfop), jnp.bfloat16),
                jax.ShapeDtypeStruct((n, heads), jnp.float32),
                jax.ShapeDtypeStruct((n, heads), jnp.float32),
            ),
            compiler_params=pltpu.CompilerParams(
                dimension_semantics=("parallel",),
                vmem_limit_bytes=vmem_limit),
            cost_estimate=cost,
        )(x_bf, w_bf, alpT, arpT)

    return _run_with_fallback(build)


# --------------------------------------------------------------------------
# Fused att_coef (pattern only) + DGL GATConv, tiled over dst rows
# --------------------------------------------------------------------------
def att_gat_kernel(flag_ref, xnd_ref, xnT_ref, adjT_ref, z_ref, elT_ref,
                   erd_ref, b_ref, maskT_ref, out_ref, *,
                   num_heads, fo_pad, activation, use_attention):
    tile, n = adjT_ref.shape
    adjT = adjT_ref[...]                 # bf16 (tile, N): adjT[j, i] = edge i -> j
    edge = adjT != 0

    if use_attention:
        # att_coef sparsity pattern: cosine similarity via plain MXU matmul
        # against the pre-transposed, pre-normalised xn^T (threshold on the
        # f32 accumulator).
        sim = jnp.dot(xnd_ref[...], xnT_ref[...],
                      preferred_element_type=jnp.float32)        # (tile, N)
        base = jnp.logical_and(edge, sim >= 0.1)                 # sim[sim<0.1]=0
        d0 = pl.multiple_of(pl.program_id(0) * tile, 128)
        rows = lax.broadcasted_iota(jnp.int32, (tile, n), 0) + d0
        cols = lax.broadcasted_iota(jnp.int32, (tile, n), 1)
        on_diag = rows == cols
        add_diag = flag_ref[0] != 0      # node-0 self-loop decision (wrapper)
        mask = jnp.logical_or(base, jnp.logical_and(on_diag, add_diag))
        maskT_ref[...] = jnp.where(mask, 1.0, 0.0).astype(jnp.bfloat16)
    else:
        mask = edge
        maskT_ref[...] = adjT            # graph unchanged when attention off

    z_all = z_ref[...]                   # (N, H*FoP) bf16, per-head padded
    elT = elT_ref[...]                   # (H, N)   f32 src projections
    erd = erd_ref[...]                   # (tile,H) f32 dst projections
    neg = jnp.float32(-1e30)

    # num_heads <= 2 in this config; the unrolled head loop keeps at most two
    # (tile, N) temporaries live.  For many heads, put heads on a grid axis.
    for h in range(num_heads):
        # e[j, i] = leaky_relu(el[i] + er[j]), slope 0.2 (DGL GATConv default)
        e = erd[:, h:h + 1] + elT[h:h + 1, :]                    # (tile, N)
        e = jnp.maximum(e, 0.2 * e)
        e = jnp.where(mask, e, neg)
        # softmax over incoming edges of each dst row -> lane-axis reduction
        m = jnp.max(e, axis=-1, keepdims=True)
        p = jnp.exp(e - m)               # masked logits (-1e30) underflow to 0
        if not use_attention:
            # no self-loop guarantee: zero-in-degree rows must stay exactly 0
            p = jnp.where(mask, p, 0.0)
        denom = jnp.sum(p, axis=-1, keepdims=True)
        if use_attention:
            # self-loops are guaranteed by att_coef, so the row max contributes
            # exp(0)=1 and denom >= 1: approx EUP reciprocal is safe here.
            inv = pl.reciprocal(denom, approx=True)
        else:
            inv = jnp.where(denom > 0.0,
                            pl.reciprocal(jnp.maximum(denom, 1.0), approx=True),
                            0.0)
        alpha = (p * inv).astype(jnp.bfloat16)
        zh = z_all[:, h * fo_pad:(h + 1) * fo_pad]               # (N, FoP)
        oh = jnp.dot(alpha, zh, preferred_element_type=jnp.float32)
        oh = oh + b_ref[:, h * fo_pad:(h + 1) * fo_pad]
        if activation:
            oh = jnp.maximum(oh, 0.01 * oh)      # F.leaky_relu (slope 0.01)
        out_ref[:, h * fo_pad:(h + 1) * fo_pad] = oh             # lane-dense store


def att_gat(flag, xn, xnT, adjT, z, elT, er, b_pad, *, num_heads, fo_pad,
            activation, use_attention, tile, vmem_limit):
    n, fin_p = xn.shape
    hfop = num_heads * fo_pad
    kern = functools.partial(
        att_gat_kernel, num_heads=num_heads, fo_pad=fo_pad,
        activation=activation, use_attention=use_attention)
    cost = pl.CostEstimate(
        flops=int(2 * n * n * fin_p + 2 * num_heads * n * n * fo_pad
                  + 10 * num_heads * n * n),
        transcendentals=int(num_heads * n * n + num_heads * n),
        bytes_accessed=int(2 * (2 * n * n + 2 * n * fin_p + n * hfop)
                           + 4 * n * hfop))

    def build(single):
        return pl.pallas_call(
            kern,
            grid=(n // tile,),
            in_specs=[
                pl.BlockSpec(memory_space=pltpu.MemorySpace.SMEM),   # add-diag flag
                pl.BlockSpec((tile, fin_p), lambda d: (d, 0)),       # xn dst rows
                _resident_spec((fin_p, n), single),                  # xn^T (resident)
                pl.BlockSpec((tile, n), lambda d: (d, 0)),           # prev adj^T tile
                _resident_spec((n, hfop), single),                   # z (resident)
                _resident_spec((num_heads, n), single),              # el^T (resident)
                pl.BlockSpec((tile, num_heads), lambda d: (d, 0)),   # er dst rows
                _resident_spec((1, hfop), single),                   # bias
            ],
            out_specs=(
                pl.BlockSpec((tile, n), lambda d: (d, 0)),           # refreshed adj^T
                pl.BlockSpec((tile, hfop), lambda d: (d, 0)),        # padded output
            ),
            out_shape=(
                jax.ShapeDtypeStruct((n, n), jnp.bfloat16),
                jax.ShapeDtypeStruct((n, hfop), jnp.float32),
            ),
            compiler_params=pltpu.CompilerParams(
                dimension_semantics=("parallel",),
                vmem_limit_bytes=vmem_limit),
            cost_estimate=cost,
        )(flag, xn, xnT, adjT, z, elT, er, b_pad)

    return _run_with_fallback(build)


def _add_diag_flag(x, adjT):
    """Reproduce att_coef's node-0 self-loop decision as a scalar.

    att_dense[0,0] == 1  -> remove diag, then re-add self-loops  => diag on
    att_dense[0,0] == 0  -> add self-loops                       => diag on
    otherwise (self-cos of node 0 rounds into [0.1, 1))          => keep only
      pre-existing diagonal entries.  Using the exact-arithmetic self-cosine
      (1 for nonzero x[0], else 0) the last branch never fires.
    """
    x0 = x[0].astype(jnp.float32)
    sim00 = jnp.where(jnp.sum(x0 * x0) > 0.0,
                      jnp.float32(1.0), jnp.float32(0.0))
    d00 = jnp.where(jnp.logical_and(adjT[0, 0] != 0, sim00 >= 0.1),
                    sim00, 0.0)
    add = jnp.logical_or(d00 >= 1.0 - 1e-6, d00 == 0.0)
    return add.astype(jnp.int32).reshape((1,))


# --------------------------------------------------------------------------
# Parameter init (host-side padding / head packing) and full forward
# --------------------------------------------------------------------------
def init_params(key, in_features, out_features, hidden_features, n_layers,
                n_heads):
    if isinstance(hidden_features, int):
        hidden_features = [hidden_features] * (n_layers - 1)
    n_features = [in_features] + list(hidden_features) + [out_features]
    params = []
    for i in range(n_layers):
        fin = n_features[i] * n_heads if i != 0 else n_features[i]
        fo = n_features[i + 1]
        heads = n_heads if i != n_layers - 1 else 1
        key, k1, k2, k3, k4 = jax.random.split(key, 5)
        gain = math.sqrt(2.0)
        w = jax.random.normal(k1, (fin, heads * fo), jnp.float32) * (
            gain / math.sqrt(fin))
        al = jax.random.normal(k2, (heads, fo), jnp.float32) * (
            gain / math.sqrt(fo))
        ar = jax.random.normal(k3, (heads, fo), jnp.float32) * (
            gain / math.sqrt(fo))
        b = jax.random.normal(k4, (1, heads * fo), jnp.float32) * 0.01

        # Host-side padding: each head gets a lane-aligned 128-wide slice; the
        # attn vectors are packed into (hfop, H) block matrices so el / er for
        # all heads come from a single plain matmul against z.
        fin_p = _round_up(fin, _LANE)
        fo_p = _round_up(fo, _LANE)
        hfop = heads * fo_p
        w_pad = jnp.zeros((fin_p, hfop), jnp.float32)
        alpT = jnp.zeros((hfop, heads), jnp.float32)
        arpT = jnp.zeros((hfop, heads), jnp.float32)
        b_pad = jnp.zeros((1, hfop), jnp.float32)
        for h in range(heads):
            w_pad = w_pad.at[:fin, h * fo_p:h * fo_p + fo].set(
                w[:, h * fo:(h + 1) * fo])
            alpT = alpT.at[h * fo_p:h * fo_p + fo, h].set(al[h])
            arpT = arpT.at[h * fo_p:h * fo_p + fo, h].set(ar[h])
            b_pad = b_pad.at[0, h * fo_p:h * fo_p + fo].set(
                b[0, h * fo:(h + 1) * fo])

        params.append(dict(
            fin=fin, out_feats=fo, num_heads=heads,
            activation=(i != n_layers - 1),
            fin_pad=fin_p, fo_pad=fo_p,
            w_pad=w_pad.astype(jnp.bfloat16),
            alpT_pad=alpT.astype(jnp.bfloat16),
            arpT_pad=arpT.astype(jnp.bfloat16),
            bias_pad=b_pad))
    return params


def gatguard_dp_forward(params, x, adj, noise_key, attention=True):
    dp_del, dp_eps = 0.05, 1.0
    noise_scale = 0.3 * math.sqrt(2 * math.log(1.25 / dp_del)) / dp_eps

    n_real = x.shape[0]
    n_pad = _round_up(max(n_real, 8), _LANE)   # lane-dense (tile, N) slabs
    vmem_limit, max_tile = _vmem_params()

    x = jnp.asarray(x, jnp.float32)
    x = jnp.pad(x, ((0, n_pad - n_real), (0, 0)))
    adjT = jnp.asarray(adj, jnp.float32)
    adjT = jnp.pad(adjT, ((0, n_pad - n_real), (0, n_pad - n_real)))
    adjT = adjT.T.astype(jnp.bfloat16)         # one-time: dst-major adjacency

    count = 0
    for p in params:
        heads, fo, fo_p = p['num_heads'], p['out_feats'], p['fo_pad']
        fin_p, hfop = p['fin_pad'], heads * fo_p
        tile = _pick_tile(n_pad, fin_p, hfop, vmem_limit, max_tile)

        x_pad = _pad_cols(x, fin_p)                            # (N, FinP) f32
        x_bf = x_pad.astype(jnp.bfloat16)

        # fc + fused el/er projections (Pallas kernel)
        z, el, er = fc(x_bf, p['w_pad'], p['alpT_pad'], p['arpT_pad'],
                       tile=tile, vmem_limit=vmem_limit)
        elT = el.T                                             # (H, N) f32

        # hoisted full-N pre-pass: cosine-normalised features (f32 norm,
        # bf16 matmul operands, pre-transposed for clean MXU feeds)
        sq = jnp.sum(x_pad * x_pad, axis=1, keepdims=True)
        inv_nrm = jnp.where(sq > 0.0, lax.rsqrt(sq), 0.0)      # zero rows -> 0
        xn = (x_pad * inv_nrm).astype(jnp.bfloat16)
        xnT = xn.T

        flag = _add_diag_flag(x, adjT)

        adjT, out_pad = att_gat(                               # fused Pallas kernel
            flag, xn, xnT, adjT, z, elT, er, p['bias_pad'],
            num_heads=heads, fo_pad=fo_p, activation=p['activation'],
            use_attention=attention, tile=tile, vmem_limit=vmem_limit)

        # drop padded lanes -> real (N, heads*out_feats) activations (flatten(1))
        if heads == 1:
            x = out_pad[:, :fo]
        else:
            x = jnp.concatenate(
                [out_pad[:, h * fo_p:h * fo_p + fo] for h in range(heads)],
                axis=1)
        if count == 0:
            # DP Gaussian noise after the first GAT layer
            g = jax.random.normal(noise_key, x.shape, x.dtype)
            x = x + noise_scale * g
            count += 1
        # dropout=0.0 and layer_norm=False in this configuration -> no-ops
    return x[:n_real]


if __name__ == "__main__":
    key = jax.random.PRNGKey(0)
    kx, kadj, kp, kn = jax.random.split(key, 4)

    N, F_IN, F_HID, F_OUT, N_LAYERS, N_HEADS = 16, 8, 16, 4, 2, 2

    x = jax.random.normal(kx, (N, F_IN), jnp.float32)
    adj = (jax.random.uniform(kadj, (N, N)) < 0.3).astype(jnp.float32)
    adj = adj * (1.0 - jnp.eye(N, dtype=jnp.float32))   # no initial self-loops

    params = init_params(kp, F_IN, F_OUT, F_HID, N_LAYERS, N_HEADS)

    out = gatguard_dp_forward(params, x, adj, kn)
    out = jax.block_until_ready(out)

    assert out.shape == (N, F_OUT), out.shape
    assert bool(jnp.all(jnp.isfinite(out)))
    print("KERNEL_OK")
</pallas_src>

<mosaic_0001>
module attributes {stable_mosaic.version = 11 : i64} {
  func.func @fc_kernel(%arg0: i32, %arg1: memref<128x128xbf16, #tpu.memory_space<vmem>>, %arg2: memref<128x256xbf16, #tpu.memory_space<vmem>>, %arg3: memref<256x2xbf16, #tpu.memory_space<vmem>>, %arg4: memref<256x2xbf16, #tpu.memory_space<vmem>>, %arg5: memref<128x256xbf16, #tpu.memory_space<vmem>>, %arg6: memref<128x2xf32, #tpu.memory_space<vmem>>, %arg7: memref<128x2xf32, #tpu.memory_space<vmem>>) attributes {dimension_semantics = [#tpu.dimension_semantics<parallel>], iteration_bounds = array<i64: 1>, scalar_prefetch = 0 : i64, scratch_operands = 0 : i64, tpu.core_type = #tpu.core_type<tc>, window_params = [{transform_indices = @transform_0, window_bounds = array<i64: 128, 128>}, {pipeline_mode = #tpu.pipeline_mode<synchronous>, transform_indices = @transform_1, window_bounds = array<i64: 128, 256>}, {pipeline_mode = #tpu.pipeline_mode<synchronous>, transform_indices = @transform_2, window_bounds = array<i64: 256, 2>}, {pipeline_mode = #tpu.pipeline_mode<synchronous>, transform_indices = @transform_3, window_bounds = array<i64: 256, 2>}, {transform_indices = @transform_4, window_bounds = array<i64: 128, 256>}, {transform_indices = @transform_5, window_bounds = array<i64: 128, 2>}, {transform_indices = @transform_6, window_bounds = array<i64: 128, 2>}]} {
    %c0 = arith.constant 0 : index
    %c0_0 = arith.constant 0 : index
    %0 = vector.load %arg1[%c0, %c0_0] : memref<128x128xbf16, #tpu.memory_space<vmem>>, vector<128x128xbf16>
    %c0_1 = arith.constant 0 : index
    %c0_2 = arith.constant 0 : index
    %1 = vector.load %arg2[%c0_1, %c0_2] : memref<128x256xbf16, #tpu.memory_space<vmem>>, vector<128x256xbf16>
    %cst = arith.constant dense<0.000000e+00> : vector<128x256xf32>
    %2 = tpu.matmul %0, %1, %cst {dimension_numbers = #tpu.dot_dimension_numbers<[1], [0], [0], [1], [0, 0, 1, 1], [], []>} : vector<128x128xbf16>, vector<128x256xbf16>, vector<128x256xf32> -> vector<128x256xf32>
    %3 = arith.truncf %2 : vector<128x256xf32> to vector<128x256xbf16>
    %c0_3 = arith.constant 0 : index
    %c0_4 = arith.constant 0 : index
    %4 = vector.load %arg5[%c0_3, %c0_4] : memref<128x256xbf16, #tpu.memory_space<vmem>>, vector<128x256xbf16>
    tpu.vector_store %arg5[%c0_3, %c0_4], %3 {strides = array<i32>} : memref<128x256xbf16, #tpu.memory_space<vmem>>, vector<128x256xbf16>,
    %c0_5 = arith.constant 0 : index
    %c0_6 = arith.constant 0 : index
    %5 = vector.load %arg3[%c0_5, %c0_6] : memref<256x2xbf16, #tpu.memory_space<vmem>>, vector<256x2xbf16>
    %cst_7 = arith.constant dense<0.000000e+00> : vector<128x2xf32>
    %6 = tpu.matmul %3, %5, %cst_7 {dimension_numbers = #tpu.dot_dimension_numbers<[1], [0], [0], [1], [0, 0, 1, 1], [], []>} : vector<128x256xbf16>, vector<256x2xbf16>, vector<128x2xf32> -> vector<128x2xf32>
    %c0_8 = arith.constant 0 : index
    %c0_9 = arith.constant 0 : index
    %7 = vector.load %arg6[%c0_8, %c0_9] : memref<128x2xf32, #tpu.memory_space<vmem>>, vector<128x2xf32>
    tpu.vector_store %arg6[%c0_8, %c0_9], %6 {strides = array<i32>} : memref<128x2xf32, #tpu.memory_space<vmem>>, vector<128x2xf32>,
    %c0_10 = arith.constant 0 : index
    %c0_11 = arith.constant 0 : index
    %8 = vector.load %arg4[%c0_10, %c0_11] : memref<256x2xbf16, #tpu.memory_space<vmem>>, vector<256x2xbf16>
    %cst_12 = arith.constant dense<0.000000e+00> : vector<128x2xf32>
    %9 = tpu.matmul %3, %8, %cst_12 {dimension_numbers = #tpu.dot_dimension_numbers<[1], [0], [0], [1], [0, 0, 1, 1], [], []>} : vector<128x256xbf16>, vector<256x2xbf16>, vector<128x2xf32> -> vector<128x2xf32>
    %c0_13 = arith.constant 0 : index
    %c0_14 = arith.constant 0 : index
    %10 = vector.load %arg7[%c0_13, %c0_14] : memref<128x2xf32, #tpu.memory_space<vmem>>, vector<128x2xf32>
    tpu.vector_store %arg7[%c0_13, %c0_14], %9 {strides = array<i32>} : memref<128x2xf32, #tpu.memory_space<vmem>>, vector<128x2xf32>,
    return
  }
  func.func @transform_0(%arg0: i32) -> (i32, i32) {
    %c0_i32 = arith.constant 0 : i32
    %c0_i32_0 = arith.constant 0 : i32
    return %arg0, %c0_i32 : i32, i32
  }
  func.func @transform_1(%arg0: i32) -> (i32, i32) {
    %c0_i32 = arith.constant 0 : i32
    %c0_i32_0 = arith.constant 0 : i32
    %c0_i32_1 = arith.constant 0 : i32
    return %c0_i32, %c0_i32_0 : i32, i32
  }
  func.func @transform_2(%arg0: i32) -> (i32, i32) {
    %c0_i32 = arith.constant 0 : i32
    %c0_i32_0 = arith.constant 0 : i32
    %c0_i32_1 = arith.constant 0 : i32
    return %c0_i32, %c0_i32_0 : i32, i32
  }
  func.func @transform_3(%arg0: i32) -> (i32, i32) {
    %c0_i32 = arith.constant 0 : i32
    %c0_i32_0 = arith.constant 0 : i32
    %c0_i32_1 = arith.constant 0 : i32
    return %c0_i32, %c0_i32_0 : i32, i32
  }
  func.func @transform_4(%arg0: i32) -> (i32, i32) {
    %c0_i32 = arith.constant 0 : i32
    %c0_i32_0 = arith.constant 0 : i32
    return %arg0, %c0_i32 : i32, i32
  }
  func.func @transform_5(%arg0: i32) -> (i32, i32) {
    %c0_i32 = arith.constant 0 : i32
    %c0_i32_0 = arith.constant 0 : i32
    return %arg0, %c0_i32 : i32, i32
  }
  func.func @transform_6(%arg0: i32) -> (i32, i32) {
    %c0_i32 = arith.constant 0 : i32
    %c0_i32_0 = arith.constant 0 : i32
    return %arg0, %c0_i32 : i32, i32
  }
}

module attributes {stable_mosaic.version = 11 : i64} {
  func.func @fc_kernel(%arg0: i32, %arg1: memref<128x128xbf16, #tpu.memory_space<vmem>>, %arg2: memref<128x256xbf16, #tpu.memory_space<vmem>>, %arg3: memref<256x2xbf16, #tpu.memory_space<vmem>>, %arg4: memref<256x2xbf16, #tpu.memory_space<vmem>>, %arg5: memref<128x256xbf16, #tpu.memory_space<vmem>>, %arg6: memref<128x2xf32, #tpu.memory_space<vmem>>, %arg7: memref<128x2xf32, #tpu.memory_space<vmem>>) attributes {dimension_semantics = [#tpu.dimension_semantics<parallel>], iteration_bounds = array<i64: 1>, scalar_prefetch = 0 : i64, scratch_operands = 0 : i64, tpu.core_type = #tpu.core_type<tc>, window_params = [{transform_indices = @transform_0, window_bounds = array<i64: 128, 128>}, {pipeline_mode = #tpu.pipeline_mode<synchronous>, transform_indices = @transform_1, window_bounds = array<i64: 128, 256>}, {pipeline_mode = #tpu.pipeline_mode<synchronous>, transform_indices = @transform_2, window_bounds = array<i64: 256, 2>}, {pipeline_mode = #tpu.pipeline_mode<synchronous>, transform_indices = @transform_3, window_bounds = array<i64: 256, 2>}, {transform_indices = @transform_4, window_bounds = array<i64: 128, 256>}, {transform_indices = @transform_5, window_bounds = array<i64: 128, 2>}, {transform_indices = @transform_6, window_bounds = array<i64: 128, 2>}]} {
    %c0 = arith.constant 0 : index
    %c0_0 = arith.constant 0 : index
    %0 = vector.load %arg1[%c0, %c0_0] : memref<128x128xbf16, #tpu.memory_space<vmem>>, vector<128x128xbf16>
    %c0_1 = arith.constant 0 : index
    %c0_2 = arith.constant 0 : index
    %1 = vector.load %arg2[%c0_1, %c0_2] : memref<128x256xbf16, #tpu.memory_space<vmem>>, vector<128x256xbf16>
    %cst = arith.constant dense<0.000000e+00> : vector<128x256xf32>
    %2 = tpu.matmul %0, %1, %cst {dimension_numbers = #tpu.dot_dimension_numbers<[1], [0], [0], [1], [0, 0, 1, 1], [], []>} : vector<128x128xbf16>, vector<128x256xbf16>, vector<128x256xf32> -> vector<128x256xf32>
    %3 = arith.truncf %2 : vector<128x256xf32> to vector<128x256xbf16>
    %c0_3 = arith.constant 0 : index
    %c0_4 = arith.constant 0 : index
    %4 = vector.load %arg5[%c0_3, %c0_4] : memref<128x256xbf16, #tpu.memory_space<vmem>>, vector<128x256xbf16>
    tpu.vector_store %arg5[%c0_3, %c0_4], %3 {strides = array<i32>} : memref<128x256xbf16, #tpu.memory_space<vmem>>, vector<128x256xbf16>,
    %c0_5 = arith.constant 0 : index
    %c0_6 = arith.constant 0 : index
    %5 = vector.load %arg3[%c0_5, %c0_6] : memref<256x2xbf16, #tpu.memory_space<vmem>>, vector<256x2xbf16>
    %cst_7 = arith.constant dense<0.000000e+00> : vector<128x2xf32>
    %6 = tpu.matmul %3, %5, %cst_7 {dimension_numbers = #tpu.dot_dimension_numbers<[1], [0], [0], [1], [0, 0, 1, 1], [], []>} : vector<128x256xbf16>, vector<256x2xbf16>, vector<128x2xf32> -> vector<128x2xf32>
    %c0_8 = arith.constant 0 : index
    %c0_9 = arith.constant 0 : index
    %7 = vector.load %arg6[%c0_8, %c0_9] : memref<128x2xf32, #tpu.memory_space<vmem>>, vector<128x2xf32>
    tpu.vector_store %arg6[%c0_8, %c0_9], %6 {strides = array<i32>} : memref<128x2xf32, #tpu.memory_space<vmem>>, vector<128x2xf32>,
    %c0_10 = arith.constant 0 : index
    %c0_11 = arith.constant 0 : index
    %8 = vector.load %arg4[%c0_10, %c0_11] : memref<256x2xbf16, #tpu.memory_space<vmem>>, vector<256x2xbf16>
    %cst_12 = arith.constant dense<0.000000e+00> : vector<128x2xf32>
    %9 = tpu.matmul %3, %8, %cst_12 {dimension_numbers = #tpu.dot_dimension_numbers<[1], [0], [0], [1], [0, 0, 1, 1], [], []>} : vector<128x256xbf16>, vector<256x2xbf16>, vector<128x2xf32> -> vector<128x2xf32>
    %c0_13 = arith.constant 0 : index
    %c0_14 = arith.constant 0 : index
    %10 = vector.load %arg7[%c0_13, %c0_14] : memref<128x2xf32, #tpu.memory_space<vmem>>, vector<128x2xf32>
    tpu.vector_store %arg7[%c0_13, %c0_14], %9 {strides = array<i32>} : memref<128x2xf32, #tpu.memory_space<vmem>>, vector<128x2xf32>,
    return
  }
  func.func @transform_0(%arg0: i32) -> (i32, i32) {
    %c0_i32 = arith.constant 0 : i32
    %c0_i32_0 = arith.constant 0 : i32
    return %arg0, %c0_i32 : i32, i32
  }
  func.func @transform_1(%arg0: i32) -> (i32, i32) {
    %c0_i32 = arith.constant 0 : i32
    %c0_i32_0 = arith.constant 0 : i32
    %c0_i32_1 = arith.constant 0 : i32
    return %c0_i32, %c0_i32_0 : i32, i32
  }
  func.func @transform_2(%arg0: i32) -> (i32, i32) {
    %c0_i32 = arith.constant 0 : i32
    %c0_i32_0 = arith.constant 0 : i32
    %c0_i32_1 = arith.constant 0 : i32
    return %c0_i32, %c0_i32_0 : i32, i32
  }
  func.func @transform_3(%arg0: i32) -> (i32, i32) {
    %c0_i32 = arith.constant 0 : i32
    %c0_i32_0 = arith.constant 0 : i32
    %c0_i32_1 = arith.constant 0 : i32
    return %c0_i32, %c0_i32_0 : i32, i32
  }
  func.func @transform_4(%arg0: i32) -> (i32, i32) {
    %c0_i32 = arith.constant 0 : i32
    %c0_i32_0 = arith.constant 0 : i32
    return %arg0, %c0_i32 : i32, i32
  }
  func.func @transform_5(%arg0: i32) -> (i32, i32) {
    %c0_i32 = arith.constant 0 : i32
    %c0_i32_0 = arith.constant 0 : i32
    return %arg0, %c0_i32 : i32, i32
  }
  func.func @transform_6(%arg0: i32) -> (i32, i32) {
    %c0_i32 = arith.constant 0 : i32
    %c0_i32_0 = arith.constant 0 : i32
    return %arg0, %c0_i32 : i32, i32
  }
}

</mosaic_0001>

<llo_original>
// kernel: tpu_custom_call.1
$region0: #{tpu_custom_call.1}
  #allocation0 [shape = 'u32[]', space=smem, size = 0x4, offset = 0x4, fixed_abs, tag = 'smem constant byte address 0x4 - core index']
  #allocation1 [shape = 'u32[144,128]{1,0:T(1,128)}', space=vmem, size = 0x12000, scoped, tag = 'internal scratch']
  %s0 = inlined_call_operand.vmem [shape: bf16[128,128], index: 0, kind: input, shape index: {}]
  %s1 = inlined_call_operand.vmem [shape: bf16[128,256], index: 1, kind: input, shape index: {}]
  %s2 = inlined_call_operand.vmem [shape: bf16[256,2], index: 2, kind: input, shape index: {}]
  %s3 = inlined_call_operand.vmem [shape: bf16[256,2], index: 3, kind: input, shape index: {}]
  %s4 = inlined_call_operand.hbm [shape: bf16[128,256], index: 4, kind: output, shape index: {0}]
  %s5 = inlined_call_operand.vmem [shape: f32[128,2], index: 5, kind: output, shape index: {1}]
  %s6 = inlined_call_operand.vmem [shape: f32[128,2], index: 6, kind: output, shape index: {2}]
  %7 = xla_tuple %s4, %s5, %s6
  %s8 = sld [smem:[#allocation0]]
  $region42: #{tpu_custom_call.1} parent=0
    _
  %s10 = ssub.s32 1, %s8
  %s11 = scalar_select 0, %s10, %s8
  $region1: #{tpu_custom_call.1} parent=0
    #allocation2 [shape = 'u8[65536]{0}', space=vmem, size = 0x10000, scoped, tag = 'output window, operand 0, single buffered']
    #allocation3 [shape = 's32[1]{0}', space=sflag, size = 0x4, scoped, tag = 'scoped memory for tpu_custom_call.1']
    %12 = vsyncpa [#allocation3], 0
    // Predicated region
    $region2: #{tpu_custom_call.1} parent=1 // pred_check
      _
    $region3: #{tpu_custom_call.1} parent=1 // pred_check_branch
      %14 = sbr.rel (0) target = $region5
    $region4: #{tpu_custom_call.1} parent=1 // pred_region
      _
    $region5: #{tpu_custom_call.1} parent=1 // pred_fallthru
      _
    // Predicated region
    $region6: #{tpu_custom_call.1} parent=1 // pred_check
      _
    $region7: #{tpu_custom_call.1} parent=1 // pred_check_branch
      %16 = sbr.rel (0) target = $region9
    $region8: #{tpu_custom_call.1} parent=1 // pred_region
      _
    $region9: #{tpu_custom_call.1} parent=1 // pred_fallthru
      _
    // Predicated region
    $region10: #{tpu_custom_call.1} parent=1 // pred_check
      _
    $region11: #{tpu_custom_call.1} parent=1 // pred_check_branch
      %18 = sbr.rel (0) target = $region13
    $region12: #{tpu_custom_call.1} parent=1 // pred_region
      _
    $region13: #{tpu_custom_call.1} parent=1 // pred_fallthru
      _
    // Predicated region
    $region14: #{tpu_custom_call.1} parent=1 // pred_check
      _
    $region15: #{tpu_custom_call.1} parent=1 // pred_check_branch
      %20 = sbr.rel (0) target = $region17
    $region16: #{tpu_custom_call.1} parent=1 // pred_region
      _
    $region17: #{tpu_custom_call.1} parent=1 // pred_fallthru
      _
    %v22 = vld [vmem:[%s0] sm:$0xf]
    %v23 = vld [vmem:[%s0 + $0x4] sm:$0xf]
    %v24 = vld [vmem:[%s0 + $0x8] sm:$0xf]
    %v25 = vld [vmem:[%s0 + $0xc] sm:$0xf]
    %v26 = vld [vmem:[%s0 + $0x10] sm:$0xf]
    %v27 = vld [vmem:[%s0 + $0x14] sm:$0xf]
    %v28 = vld [vmem:[%s0 + $0x18] sm:$0xf]
    %v29 = vld [vmem:[%s0 + $0x1c] sm:$0xf]
    %v30 = vld [vmem:[%s0 + $0x20] sm:$0xf]
    %v31 = vld [vmem:[%s0 + $0x24] sm:$0xf]
    %v32 = vld [vmem:[%s0 + $0x28] sm:$0xf]
    %v33 = vld [vmem:[%s0 + $0x2c] sm:$0xf]
    %v34 = vld [vmem:[%s0 + $0x30] sm:$0xf]
    %v35 = vld [vmem:[%s0 + $0x34] sm:$0xf]
    %v36 = vld [vmem:[%s0 + $0x38] sm:$0xf]
    %v37 = vld [vmem:[%s0 + $0x3c] sm:$0xf]
    %v38 = vld [vmem:[%s1] sm:$0xff]
    %v39 = vld [vmem:[%s1 + $0x8] sm:$0xff]
    %v40 = vld [vmem:[%s1 + $0x10] sm:$0xff]
    %v41 = vld [vmem:[%s1 + $0x18] sm:$0xff]
    %v42 = vld [vmem:[%s1 + $0x20] sm:$0xff]
    %v43 = vld [vmem:[%s1 + $0x28] sm:$0xff]
    %v44 = vld [vmem:[%s1 + $0x30] sm:$0xff]
    %v45 = vld [vmem:[%s1 + $0x38] sm:$0xff]
    %v46 = vld [vmem:[%s1 + $0x40] sm:$0xff]
    %v47 = vld [vmem:[%s1 + $0x48] sm:$0xff]
    %v48 = vld [vmem:[%s1 + $0x50] sm:$0xff]
    %v49 = vld [vmem:[%s1 + $0x58] sm:$0xff]
    %v50 = vld [vmem:[%s1 + $0x60] sm:$0xff]
    %v51 = vld [vmem:[%s1 + $0x68] sm:$0xff]
    %v52 = vld [vmem:[%s1 + $0x70] sm:$0xff]
    %v53 = vld [vmem:[%s1 + $0x78] sm:$0xff]
    %v70 = vunpack.c.l.b16 %v22
    %v71 = vunpack.c.l.b16 %v23
    %v72 = vunpack.c.l.b16 %v24
    %v73 = vunpack.c.l.b16 %v25
    %v74 = vunpack.c.l.b16 %v26
    %v75 = vunpack.c.l.b16 %v27
    %v76 = vunpack.c.l.b16 %v28
    %v77 = vunpack.c.l.b16 %v29
    %v78 = vunpack.c.l.b16 %v30
    %v79 = vunpack.c.l.b16 %v31
    %v80 = vunpack.c.l.b16 %v32
    %v81 = vunpack.c.l.b16 %v33
    %v82 = vunpack.c.l.b16 %v34
    %v83 = vunpack.c.l.b16 %v35
    %v84 = vunpack.c.l.b16 %v36
    %v85 = vunpack.c.l.b16 %v37
    %v86 = vpack.c.b16 %v71, %v70
    %v87 = vpack.c.b16 %v73, %v72
    %v88 = vpack.c.b16 %v75, %v74
    %v89 = vpack.c.b16 %v77, %v76
    %v90 = vpack.c.b16 %v79, %v78
    %v91 = vpack.c.b16 %v81, %v80
    %v92 = vpack.c.b16 %v83, %v82
    %v93 = vpack.c.b16 %v85, %v84
    %v118 = vunpack.c.l.b16 %v38
    %v119 = vunpack.c.h.b16 %v38
    %v120 = vunpack.c.l.b16 %v39
    %v121 = vunpack.c.h.b16 %v39
    %v122 = vunpack.c.l.b16 %v40
    %v123 = vunpack.c.h.b16 %v40
    %v124 = vunpack.c.l.b16 %v41
    %v125 = vunpack.c.h.b16 %v41
    %v126 = vunpack.c.l.b16 %v42
    %v127 = vunpack.c.h.b16 %v42
    %v128 = vunpack.c.l.b16 %v43
    %v129 = vunpack.c.h.b16 %v43
    %v130 = vunpack.c.l.b16 %v44
    %v131 = vunpack.c.h.b16 %v44
    %v132 = vunpack.c.l.b16 %v45
    %v133 = vunpack.c.h.b16 %v45
    %v134 = vunpack.c.l.b16 %v46
    %v135 = vunpack.c.h.b16 %v46
    %v136 = vunpack.c.l.b16 %v47
    %v137 = vunpack.c.h.b16 %v47
    %v138 = vunpack.c.l.b16 %v48
    %v139 = vunpack.c.h.b16 %v48
    %v140 = vunpack.c.l.b16 %v49
    %v141 = vunpack.c.h.b16 %v49
    %v142 = vunpack.c.l.b16 %v50
    %v143 = vunpack.c.h.b16 %v50
    %v144 = vunpack.c.l.b16 %v51
    %v145 = vunpack.c.h.b16 %v51
    %v146 = vunpack.c.l.b16 %v52
    %v147 = vunpack.c.h.b16 %v52
    %v148 = vunpack.c.l.b16 %v53
    %v149 = vunpack.c.h.b16 %v53
    %v150 = vpack.c.b16 %v120, %v118
    %v151 = vpack.c.b16 %v121, %v119
    %v152 = vpack.c.b16 %v124, %v122
    %v153 = vpack.c.b16 %v125, %v123
    %v154 = vpack.c.b16 %v128, %v126
    %v155 = vpack.c.b16 %v129, %v127
    %v156 = vpack.c.b16 %v132, %v130
    %v157 = vpack.c.b16 %v133, %v131
    %v158 = vpack.c.b16 %v136, %v134
    %v159 = vpack.c.b16 %v137, %v135
    %v160 = vpack.c.b16 %v140, %v138
    %v161 = vpack.c.b16 %v141, %v139
    %v162 = vpack.c.b16 %v144, %v142
    %v163 = vpack.c.b16 %v145, %v143
    %v164 = vpack.c.b16 %v148, %v146
    %v165 = vpack.c.b16 %v149, %v147
    %182 = vmatprep.subr.bf16.mxu0 %v151
    %183 = vmatpush1.bf16.msra.mxu0 %v150
    %184 = vmatprep.subr.bf16.mxu0 %v153
    %185 = vmatpush1.bf16.msra.mxu0 %v152
    %186 = vmatprep.subr.bf16.mxu0 %v155
    %187 = vmatpush1.bf16.msra.mxu0 %v154
    %188 = vmatprep.subr.bf16.mxu0 %v157
    %189 = vmatpush1.bf16.msra.mxu0 %v156
    %190 = vmatprep.subr.bf16.mxu0 %v159
    %191 = vmatpush1.bf16.msra.mxu0 %v158
    %192 = vmatprep.subr.bf16.mxu0 %v161
    %193 = vmatpush1.bf16.msra.mxu0 %v160
    %194 = vmatprep.subr.bf16.mxu0 %v163
    %195 = vmatpush1.bf16.msra.mxu0 %v162
    %196 = vmatprep.subr.bf16.mxu0 %v165
    %197 = vmatpush1.bf16.msra.mxu0 %v164
    %198 = vmatprep.subr.bf16.mxu0 0
    %199 = vmatpush1.bf16.msra.mxu0 0
    %200 = vmatprep.subr.bf16.mxu0 0
    %201 = vmatpush1.bf16.msra.mxu0 0
    %202 = vmatprep.subr.bf16.mxu0 0
    %203 = vmatpush1.bf16.msra.mxu0 0
    %204 = vmatprep.subr.bf16.mxu0 0
    %205 = vmatpush1.bf16.msra.mxu0 0
    %206 = vmatprep.subr.bf16.mxu0 0
    %207 = vmatpush1.bf16.msra.mxu0 0
    %208 = vmatprep.subr.bf16.mxu0 0
    %209 = vmatpush1.bf16.msra.mxu0 0
    %210 = vmatprep.subr.bf16.mxu0 0
    %211 = vmatpush1.bf16.msra.mxu0 0
    %212 = vmatprep.subr.bf16.mxu0 0
    %213 = vmatpush1.bf16.msra.mxu0 0
    %214 = vmatprep.mubr.bf16.mxu0 0
    %215 = vmatmul.mubr.bf16.gmra.mrb[0].mxu0 %v86
    %v216 = vpop.f32.mrb[0].mxu0
    %v217 = vadd.f32 0.0, %v216
    %v218 = vpop.f32.mrb[0].mxu0
    %v219 = vadd.f32 0.0, %v218
    %v220 = vpop.f32.mrb[0].mxu0
    %v221 = vadd.f32 0.0, %v220
    %v222 = vpop.f32.mrb[0].mxu0
    %v223 = vadd.f32 0.0, %v222
    %224 = vmatprep.mubr.bf16.mxu0 0
    %225 = vmatmul.mubr.bf16.gmra.mrb[0].mxu0 %v87
    %v226 = vpop.f32.mrb[0].mxu0
    %v227 = vadd.f32 0.0, %v226
    %v228 = vpop.f32.mrb[0].mxu0
    %v229 = vadd.f32 0.0, %v228
    %v230 = vpop.f32.mrb[0].mxu0
    %v231 = vadd.f32 0.0, %v230
    %v232 = vpop.f32.mrb[0].mxu0
    %v233 = vadd.f32 0.0, %v232
    %234 = vmatprep.mubr.bf16.mxu0 0
    %235 = vmatmul.mubr.bf16.gmra.mrb[0].mxu0 %v88
    %v236 = vpop.f32.mrb[0].mxu0
    %v237 = vadd.f32 0.0, %v236
    %v238 = vpop.f32.mrb[0].mxu0
    %v239 = vadd.f32 0.0, %v238
    %v240 = vpop.f32.mrb[0].mxu0
    %v241 = vadd.f32 0.0, %v240
    %v242 = vpop.f32.mrb[0].mxu0
    %v243 = vadd.f32 0.0, %v242
    %244 = vmatprep.mubr.bf16.mxu0 0
    %245 = vmatmul.mubr.bf16.gmra.mrb[0].mxu0 %v89
    %v246 = vpop.f32.mrb[0].mxu0
    %v247 = vadd.f32 0.0, %v246
    %v248 = vpop.f32.mrb[0].mxu0
    %v249 = vadd.f32 0.0, %v248
    %v250 = vpop.f32.mrb[0].mxu0
    %v251 = vadd.f32 0.0, %v250
    %v252 = vpop.f32.mrb[0].mxu0
    %v253 = vadd.f32 0.0, %v252
    %254 = vmatprep.mubr.bf16.mxu0 0
    %255 = vmatmul.mubr.bf16.gmra.mrb[0].mxu0 %v90
    %v256 = vpop.f32.mrb[0].mxu0
    %v257 = vadd.f32 0.0, %v256
    %v258 = vpop.f32.mrb[0].mxu0
    %v259 = vadd.f32 0.0, %v258
    %v260 = vpop.f32.mrb[0].mxu0
    %v261 = vadd.f32 0.0, %v260
    %v262 = vpop.f32.mrb[0].mxu0
    %v263 = vadd.f32 0.0, %v262
    %264 = vmatprep.mubr.bf16.mxu0 0
    %265 = vmatmul.mubr.bf16.gmra.mrb[0].mxu0 %v91
    %v266 = vpop.f32.mrb[0].mxu0
    %v267 = vadd.f32 0.0, %v266
    %v268 = vpop.f32.mrb[0].mxu0
    %v269 = vadd.f32 0.0, %v268
    %v270 = vpop.f32.mrb[0].mxu0
    %v271 = vadd.f32 0.0, %v270
    %v272 = vpop.f32.mrb[0].mxu0
    %v273 = vadd.f32 0.0, %v272
    %274 = vmatprep.mubr.bf16.mxu0 0
    %275 = vmatmul.mubr.bf16.gmra.mrb[0].mxu0 %v92
    %v276 = vpop.f32.mrb[0].mxu0
    %v277 = vadd.f32 0.0, %v276
    %v278 = vpop.f32.mrb[0].mxu0
    %v279 = vadd.f32 0.0, %v278
    %v280 = vpop.f32.mrb[0].mxu0
    %v281 = vadd.f32 0.0, %v280
    %v282 = vpop.f32.mrb[0].mxu0
    %v283 = vadd.f32 0.0, %v282
    %284 = vmatprep.mubr.bf16.mxu0 0
    %285 = vmatmul.mubr.bf16.gmra.mrb[0].mxu0 %v93
    %v286 = vpop.f32.mrb[0].mxu0
    %v287 = vadd.f32 0.0, %v286
    %v288 = vpop.f32.mrb[0].mxu0
    %v289 = vadd.f32 0.0, %v288
    %v290 = vpop.f32.mrb[0].mxu0
    %v291 = vadd.f32 0.0, %v290
    %v292 = vpop.f32.mrb[0].mxu0
    %v293 = vadd.f32 0.0, %v292
    %294 = vdwg.mxu0
    %v295 = vpack.c.bf16 %v221, %v217
    %v296 = vpack.c.bf16 %v223, %v219
    %v297 = vpack.c.bf16 %v231, %v227
    %v298 = vpack.c.bf16 %v233, %v229
    %v299 = vpack.c.bf16 %v241, %v237
    %v300 = vpack.c.bf16 %v243, %v239
    %v301 = vpack.c.bf16 %v251, %v247
    %v302 = vpack.c.bf16 %v253, %v249
    %v303 = vpack.c.bf16 %v261, %v257
    %v304 = vpack.c.bf16 %v263, %v259
    %v305 = vpack.c.bf16 %v271, %v267
    %v306 = vpack.c.bf16 %v273, %v269
    %v307 = vpack.c.bf16 %v281, %v277
    %v308 = vpack.c.bf16 %v283, %v279
    %v309 = vpack.c.bf16 %v291, %v287
    %v310 = vpack.c.bf16 %v293, %v289
    %v327 = vunpack.c.l.b16 %v295
    %v328 = vunpack.c.l.b16 %v296
    %v329 = vunpack.c.h.b16 %v295
    %v330 = vunpack.c.h.b16 %v296
    %v331 = vunpack.c.l.b16 %v297
    %v332 = vunpack.c.l.b16 %v298
    %v333 = vunpack.c.h.b16 %v297
    %v334 = vunpack.c.h.b16 %v298
    %v335 = vunpack.c.l.b16 %v299
    %v336 = vunpack.c.l.b16 %v300
    %v337 = vunpack.c.h.b16 %v299
    %v338 = vunpack.c.h.b16 %v300
    %v339 = vunpack.c.l.b16 %v301
    %v340 = vunpack.c.l.b16 %v302
    %v341 = vunpack.c.h.b16 %v301
    %v342 = vunpack.c.h.b16 %v302
    %v343 = vunpack.c.l.b16 %v303
    %v344 = vunpack.c.l.b16 %v304
    %v345 = vunpack.c.h.b16 %v303
    %v346 = vunpack.c.h.b16 %v304
    %v347 = vunpack.c.l.b16 %v305
    %v348 = vunpack.c.l.b16 %v306
    %v349 = vunpack.c.h.b16 %v305
    %v350 = vunpack.c.h.b16 %v306
    %v351 = vunpack.c.l.b16 %v307
    %v352 = vunpack.c.l.b16 %v308
    %v353 = vunpack.c.h.b16 %v307
    %v354 = vunpack.c.h.b16 %v308
    %v355 = vunpack.c.l.b16 %v309
    %v356 = vunpack.c.l.b16 %v310
    %v357 = vunpack.c.h.b16 %v309
    %v358 = vunpack.c.h.b16 %v310
    %v359 = vpack.c.b16 %v328, %v327
    %v360 = vpack.c.b16 %v330, %v329
    %v361 = vpack.c.b16 %v332, %v331
    %v362 = vpack.c.b16 %v334, %v333
    %v363 = vpack.c.b16 %v336, %v335
    %v364 = vpack.c.b16 %v338, %v337
    %v365 = vpack.c.b16 %v340, %v339
    %v366 = vpack.c.b16 %v342, %v341
    %v367 = vpack.c.b16 %v344, %v343
    %v368 = vpack.c.b16 %v346, %v345
    %v369 = vpack.c.b16 %v348, %v347
    %v370 = vpack.c.b16 %v350, %v349
    %v371 = vpack.c.b16 %v352, %v351
    %v372 = vpack.c.b16 %v354, %v353
    %v373 = vpack.c.b16 %v356, %v355
    %v374 = vpack.c.b16 %v358, %v357
    %391 = vst [vmem:[#allocation2] sm:$0xff] %v359
    %392 = vst [vmem:[#allocation2 + $0x8] sm:$0xff] %v360
    %393 = vst [vmem:[#allocation2 + $0x10] sm:$0xff] %v361
    %394 = vst [vmem:[#allocation2 + $0x18] sm:$0xff] %v362
    %395 = vst [vmem:[#allocation2 + $0x20] sm:$0xff] %v363
    %396 = vst [vmem:[#allocation2 + $0x28] sm:$0xff] %v364
    %397 = vst [vmem:[#allocation2 + $0x30] sm:$0xff] %v365
    %398 = vst [vmem:[#allocation2 + $0x38] sm:$0xff] %v366
    %399 = vst [vmem:[#allocation2 + $0x40] sm:$0xff] %v367
    %400 = vst [vmem:[#allocation2 + $0x48] sm:$0xff] %v368
    %401 = vst [vmem:[#allocation2 + $0x50] sm:$0xff] %v369
    %402 = vst [vmem:[#allocation2 + $0x58] sm:$0xff] %v370
    %403 = vst [vmem:[#allocation2 + $0x60] sm:$0xff] %v371
    %404 = vst [vmem:[#allocation2 + $0x68] sm:$0xff] %v372
    %405 = vst [vmem:[#allocation2 + $0x70] sm:$0xff] %v373
    %406 = vst [vmem:[#allocation2 + $0x78] sm:$0xff] %v374
    %v407 = vld [vmem:[%s2] sm:$0xf]
    %v408 = vld [vmem:[%s2 + $0x4] sm:$0xf]
    %v409 = vld [vmem:[%s2 + $0x8] sm:$0xf]
    %v410 = vld [vmem:[%s2 + $0xc] sm:$0xf]
    %v411 = vld [vmem:[%s2 + $0x10] sm:$0xf]
    %v412 = vld [vmem:[%s2 + $0x14] sm:$0xf]
    %v413 = vld [vmem:[%s2 + $0x18] sm:$0xf]
    %v414 = vld [vmem:[%s2 + $0x1c] sm:$0xf]
    %v415 = vld [vmem:[%s2 + $0x20] sm:$0xf]
    %v416 = vld [vmem:[%s2 + $0x24] sm:$0xf]
    %v417 = vld [vmem:[%s2 + $0x28] sm:$0xf]
    %v418 = vld [vmem:[%s2 + $0x2c] sm:$0xf]
    %v419 = vld [vmem:[%s2 + $0x30] sm:$0xf]
    %v420 = vld [vmem:[%s2 + $0x34] sm:$0xf]
    %v421 = vld [vmem:[%s2 + $0x38] sm:$0xf]
    %v422 = vld [vmem:[%s2 + $0x3c] sm:$0xf]
    %v423 = vld [vmem:[%s2 + $0x40] sm:$0xf]
    %v424 = vld [vmem:[%s2 + $0x44] sm:$0xf]
    %v425 = vld [vmem:[%s2 + $0x48] sm:$0xf]
    %v426 = vld [vmem:[%s2 + $0x4c] sm:$0xf]
    %v427 = vld [vmem:[%s2 + $0x50] sm:$0xf]
    %v428 = vld [vmem:[%s2 + $0x54] sm:$0xf]
    %v429 = vld [vmem:[%s2 + $0x58] sm:$0xf]
    %v430 = vld [vmem:[%s2 + $0x5c] sm:$0xf]
    %v431 = vld [vmem:[%s2 + $0x60] sm:$0xf]
    %v432 = vld [vmem:[%s2 + $0x64] sm:$0xf]
    %v433 = vld [vmem:[%s2 + $0x68] sm:$0xf]
    %v434 = vld [vmem:[%s2 + $0x6c] sm:$0xf]
    %v435 = vld [vmem:[%s2 + $0x70] sm:$0xf]
    %v436 = vld [vmem:[%s2 + $0x74] sm:$0xf]
    %v437 = vld [vmem:[%s2 + $0x78] sm:$0xf]
    %v438 = vld [vmem:[%s2 + $0x7c] sm:$0xf]
    %v471 = vunpack.c.l.b16 %v407
    %v472 = vunpack.c.l.b16 %v408
    %v473 = vunpack.c.l.b16 %v409
    %v474 = vunpack.c.l.b16 %v410
    %v475 = vunpack.c.l.b16 %v411
    %v476 = vunpack.c.l.b16 %v412
    %v477 = vunpack.c.l.b16 %v413
    %v478 = vunpack.c.l.b16 %v414
    %v479 = vunpack.c.l.b16 %v415
    %v480 = vunpack.c.l.b16 %v416
    %v481 = vunpack.c.l.b16 %v417
    %v482 = vunpack.c.l.b16 %v418
    %v483 = vunpack.c.l.b16 %v419
    %v484 = vunpack.c.l.b16 %v420
    %v485 = vunpack.c.l.b16 %v421
    %v486 = vunpack.c.l.b16 %v422
    %v487 = vunpack.c.l.b16 %v423
    %v488 = vunpack.c.l.b16 %v424
    %v489 = vunpack.c.l.b16 %v425
    %v490 = vunpack.c.l.b16 %v426
    %v491 = vunpack.c.l.b16 %v427
    %v492 = vunpack.c.l.b16 %v428
    %v493 = vunpack.c.l.b16 %v429
    %v494 = vunpack.c.l.b16 %v430
    %v495 = vunpack.c.l.b16 %v431
    %v496 = vunpack.c.l.b16 %v432
    %v497 = vunpack.c.l.b16 %v433
    %v498 = vunpack.c.l.b16 %v434
    %v499 = vunpack.c.l.b16 %v435
    %v500 = vunpack.c.l.b16 %v436
    %v501 = vunpack.c.l.b16 %v437
    %v502 = vunpack.c.l.b16 %v438
    %v503 = vpack.c.b16 %v472, %v471
    %v504 = vpack.c.b16 %v474, %v473
    %v505 = vpack.c.b16 %v476, %v475
    %v506 = vpack.c.b16 %v478, %v477
    %v507 = vpack.c.b16 %v480, %v479
    %v508 = vpack.c.b16 %v482, %v481
    %v509 = vpack.c.b16 %v484, %v483
    %v510 = vpack.c.b16 %v486, %v485
    %v511 = vpack.c.b16 %v488, %v487
    %v512 = vpack.c.b16 %v490, %v489
    %v513 = vpack.c.b16 %v492, %v491
    %v514 = vpack.c.b16 %v494, %v493
    %v515 = vpack.c.b16 %v496, %v495
    %v516 = vpack.c.b16 %v498, %v497
    %v517 = vpack.c.b16 %v500, %v499
    %v518 = vpack.c.b16 %v502, %v501
    %535 = vmatprep.subr.bf16.mxu0 0
    %536 = vmatpush1.bf16.msra.mxu0 %v503
    %537 = vmatprep.subr.bf16.mxu0 0
    %538 = vmatpush1.bf16.msra.mxu0 %v504
    %539 = vmatprep.subr.bf16.mxu0 0
    %540 = vmatpush1.bf16.msra.mxu0 %v505
    %541 = vmatprep.subr.bf16.mxu0 0
    %542 = vmatpush1.bf16.msra.mxu0 %v506
    %543 = vmatprep.subr.bf16.mxu0 0
    %544 = vmatpush1.bf16.msra.mxu0 %v507
    %545 = vmatprep.subr.bf16.mxu0 0
    %546 = vmatpush1.bf16.msra.mxu0 %v508
    %547 = vmatprep.subr.bf16.mxu0 0
    %548 = vmatpush1.bf16.msra.mxu0 %v509
    %549 = vmatprep.subr.bf16.mxu0 0
    %550 = vmatpush1.bf16.msra.mxu0 %v510
    %551 = vmatprep.subr.bf16.mxu0 0
    %552 = vmatpush1.bf16.msra.mxu0 %v511
    %553 = vmatprep.subr.bf16.mxu0 0
    %554 = vmatpush1.bf16.msra.mxu0 %v512
    %555 = vmatprep.subr.bf16.mxu0 0
    %556 = vmatpush1.bf16.msra.mxu0 %v513
    %557 = vmatprep.subr.bf16.mxu0 0
    %558 = vmatpush1.bf16.msra.mxu0 %v514
    %559 = vmatprep.subr.bf16.mxu0 0
    %560 = vmatpush1.bf16.msra.mxu0 %v515
    %561 = vmatprep.subr.bf16.mxu0 0
    %562 = vmatpush1.bf16.msra.mxu0 %v516
    %563 = vmatprep.subr.bf16.mxu0 0
    %564 = vmatpush1.bf16.msra.mxu0 %v517
    %565 = vmatprep.subr.bf16.mxu0 0
    %566 = vmatpush1.bf16.msra.mxu0 %v518
    %567 = vmatprep.mubr.bf16.mxu0 %v296
    %568 = vmatmul.mubr.bf16.gmra.mrb[0].mxu0 %v295
    %v569 = vpop.f32.mrb[0].mxu0
    %v570 = vadd.f32 0.0, %v569
    %v571 = vpop.f32.mrb[0].mxu0
    %v572 = vpop.f32.mrb[0].mxu0
    %v573 = vadd.f32 0.0, %v572
    %v574 = vpop.f32.mrb[0].mxu0
    %575 = vmatprep.mubr.bf16.mxu0 %v298
    %576 = vmatmul.mubr.bf16.gmra.mrb[0].mxu0 %v297
    %v577 = vpop.f32.mrb[0].mxu0
    %v578 = vadd.f32 0.0, %v577
    %v579 = vpop.f32.mrb[0].mxu0
    %v580 = vpop.f32.mrb[0].mxu0
    %v581 = vadd.f32 0.0, %v580
    %v582 = vpop.f32.mrb[0].mxu0
    %583 = vmatprep.mubr.bf16.mxu0 %v300
    %584 = vmatmul.mubr.bf16.gmra.mrb[0].mxu0 %v299
    %v585 = vpop.f32.mrb[0].mxu0
    %v586 = vadd.f32 0.0, %v585
    %v587 = vpop.f32.mrb[0].mxu0
    %v588 = vpop.f32.mrb[0].mxu0
    %v589 = vadd.f32 0.0, %v588
    %v590 = vpop.f32.mrb[0].mxu0
    %591 = vmatprep.mubr.bf16.mxu0 %v302
    %592 = vmatmul.mubr.bf16.gmra.mrb[0].mxu0 %v301
    %v593 = vpop.f32.mrb[0].mxu0
    %v594 = vadd.f32 0.0, %v593
    %v595 = vpop.f32.mrb[0].mxu0
    %v596 = vpop.f32.mrb[0].mxu0
    %v597 = vadd.f32 0.0, %v596
    %v598 = vpop.f32.mrb[0].mxu0
    %599 = vmatprep.mubr.bf16.mxu0 %v304
    %600 = vmatmul.mubr.bf16.gmra.mrb[0].mxu0 %v303
    %v601 = vpop.f32.mrb[0].mxu0
    %v602 = vadd.f32 0.0, %v601
    %v603 = vpop.f32.mrb[0].mxu0
    %v604 = vpop.f32.mrb[0].mxu0
    %v605 = vadd.f32 0.0, %v604
    %v606 = vpop.f32.mrb[0].mxu0
    %607 = vmatprep.mubr.bf16.mxu0 %v306
    %608 = vmatmul.mubr.bf16.gmra.mrb[0].mxu0 %v305
    %v609 = vpop.f32.mrb[0].mxu0
    %v610 = vadd.f32 0.0, %v609
    %v611 = vpop.f32.mrb[0].mxu0
    %v612 = vpop.f32.mrb[0].mxu0
    %v613 = vadd.f32 0.0, %v612
    %v614 = vpop.f32.mrb[0].mxu0
    %615 = vmatprep.mubr.bf16.mxu0 %v308
    %616 = vmatmul.mubr.bf16.gmra.mrb[0].mxu0 %v307
    %v617 = vpop.f32.mrb[0].mxu0
    %v618 = vadd.f32 0.0, %v617
    %v619 = vpop.f32.mrb[0].mxu0
    %v620 = vpop.f32.mrb[0].mxu0
    %v621 = vadd.f32 0.0, %v620
    %v622 = vpop.f32.mrb[0].mxu0
    %623 = vmatprep.mubr.bf16.mxu0 %v310
    %624 = vmatmul.mubr.bf16.gmra.mrb[0].mxu0 %v309
    %v625 = vpop.f32.mrb[0].mxu0
    %v626 = vadd.f32 0.0, %v625
    %v627 = vpop.f32.mrb[0].mxu0
    %v628 = vpop.f32.mrb[0].mxu0
    %v629 = vadd.f32 0.0, %v628
    %v630 = vpop.f32.mrb[0].mxu0
    %631 = vdwg.mxu0
    %vm632 = vcmask 15360
    %633 = vst.msk [vmem:[%s5] sm:$0xff] %vm632, %v570
    %634 = vst.msk [vmem:[%s5 + $0x8] sm:$0xff] %vm632, %v573
    %635 = vst.msk [vmem:[%s5 + $0x10] sm:$0xff] %vm632, %v578
    %636 = vst.msk [vmem:[%s5 + $0x18] sm:$0xff] %vm632, %v581
    %637 = vst.msk [vmem:[%s5 + $0x20] sm:$0xff] %vm632, %v586
    %638 = vst.msk [vmem:[%s5 + $0x28] sm:$0xff] %vm632, %v589
    %639 = vst.msk [vmem:[%s5 + $0x30] sm:$0xff] %vm632, %v594
    %640 = vst.msk [vmem:[%s5 + $0x38] sm:$0xff] %vm632, %v597
    %641 = vst.msk [vmem:[%s5 + $0x40] sm:$0xff] %vm632, %v602
    %642 = vst.msk [vmem:[%s5 + $0x48] sm:$0xff] %vm632, %v605
    %643 = vst.msk [vmem:[%s5 + $0x50] sm:$0xff] %vm632, %v610
    %644 = vst.msk [vmem:[%s5 + $0x58] sm:$0xff] %vm632, %v613
    %645 = vst.msk [vmem:[%s5 + $0x60] sm:$0xff] %vm632, %v618
    %646 = vst.msk [vmem:[%s5 + $0x68] sm:$0xff] %vm632, %v621
    %647 = vst.msk [vmem:[%s5 + $0x70] sm:$0xff] %vm632, %v626
    %648 = vst.msk [vmem:[%s5 + $0x78] sm:$0xff] %vm632, %v629
    %v649 = vld [vmem:[%s3] sm:$0xf]
    %v650 = vld [vmem:[%s3 + $0x4] sm:$0xf]
    %v651 = vld [vmem:[%s3 + $0x8] sm:$0xf]
    %v652 = vld [vmem:[%s3 + $0xc] sm:$0xf]
    %v653 = vld [vmem:[%s3 + $0x10] sm:$0xf]
    %v654 = vld [vmem:[%s3 + $0x14] sm:$0xf]
    %v655 = vld [vmem:[%s3 + $0x18] sm:$0xf]
    %v656 = vld [vmem:[%s3 + $0x1c] sm:$0xf]
    %v657 = vld [vmem:[%s3 + $0x20] sm:$0xf]
    %v658 = vld [vmem:[%s3 + $0x24] sm:$0xf]
    %v659 = vld [vmem:[%s3 + $0x28] sm:$0xf]
    %v660 = vld [vmem:[%s3 + $0x2c] sm:$0xf]
    %v661 = vld [vmem:[%s3 + $0x30] sm:$0xf]
    %v662 = vld [vmem:[%s3 + $0x34] sm:$0xf]
    %v663 = vld [vmem:[%s3 + $0x38] sm:$0xf]
    %v664 = vld [vmem:[%s3 + $0x3c] sm:$0xf]
    %v665 = vld [vmem:[%s3 + $0x40] sm:$0xf]
    %v666 = vld [vmem:[%s3 + $0x44] sm:$0xf]
    %v667 = vld [vmem:[%s3 + $0x48] sm:$0xf]
    %v668 = vld [vmem:[%s3 + $0x4c] sm:$0xf]
    %v669 = vld [vmem:[%s3 + $0x50] sm:$0xf]
    %v670 = vld [vmem:[%s3 + $0x54] sm:$0xf]
    %v671 = vld [vmem:[%s3 + $0x58] sm:$0xf]
    %v672 = vld [vmem:[%s3 + $0x5c] sm:$0xf]
    %v673 = vld [vmem:[%s3 + $0x60] sm:$0xf]
    %v674 = vld [vmem:[%s3 + $0x64] sm:$0xf]
    %v675 = vld [vmem:[%s3 + $0x68] sm:$0xf]
    %v676 = vld [vmem:[%s3 + $0x6c] sm:$0xf]
    %v677 = vld [vmem:[%s3 + $0x70] sm:$0xf]
    %v678 = vld [vmem:[%s3 + $0x74] sm:$0xf]
    %v679 = vld [vmem:[%s3 + $0x78] sm:$0xf]
    %v680 = vld [vmem:[%s3 + $0x7c] sm:$0xf]
    %v713 = vunpack.c.l.b16 %v649
    %v714 = vunpack.c.l.b16 %v650
    %v715 = vunpack.c.l.b16 %v651
    %v716 = vunpack.c.l.b16 %v652
    %v717 = vunpack.c.l.b16 %v653
    %v718 = vunpack.c.l.b16 %v654
    %v719 = vunpack.c.l.b16 %v655
    %v720 = vunpack.c.l.b16 %v656
    %v721 = vunpack.c.l.b16 %v657
    %v722 = vunpack.c.l.b16 %v658
    %v723 = vunpack.c.l.b16 %v659
    %v724 = vunpack.c.l.b16 %v660
    %v725 = vunpack.c.l.b16 %v661
    %v726 = vunpack.c.l.b16 %v662
    %v727 = vunpack.c.l.b16 %v663
    %v728 = vunpack.c.l.b16 %v664
    %v729 = vunpack.c.l.b16 %v665
    %v730 = vunpack.c.l.b16 %v666
    %v731 = vunpack.c.l.b16 %v667
    %v732 = vunpack.c.l.b16 %v668
    %v733 = vunpack.c.l.b16 %v669
    %v734 = vunpack.c.l.b16 %v670
    %v735 = vunpack.c.l.b16 %v671
    %v736 = vunpack.c.l.b16 %v672
    %v737 = vunpack.c.l.b16 %v673
    %v738 = vunpack.c.l.b16 %v674
    %v739 = vunpack.c.l.b16 %v675
    %v740 = vunpack.c.l.b16 %v676
    %v741 = vunpack.c.l.b16 %v677
    %v742 = vunpack.c.l.b16 %v678
    %v743 = vunpack.c.l.b16 %v679
    %v744 = vunpack.c.l.b16 %v680
    %v745 = vpack.c.b16 %v714, %v713
    %v746 = vpack.c.b16 %v716, %v715
    %v747 = vpack.c.b16 %v718, %v717
    %v748 = vpack.c.b16 %v720, %v719
    %v749 = vpack.c.b16 %v722, %v721
    %v750 = vpack.c.b16 %v724, %v723
    %v751 = vpack.c.b16 %v726, %v725
    %v752 = vpack.c.b16 %v728, %v727
    %v753 = vpack.c.b16 %v730, %v729
    %v754 = vpack.c.b16 %v732, %v731
    %v755 = vpack.c.b16 %v734, %v733
    %v756 = vpack.c.b16 %v736, %v735
    %v757 = vpack.c.b16 %v738, %v737
    %v758 = vpack.c.b16 %v740, %v739
    %v759 = vpack.c.b16 %v742, %v741
    %v760 = vpack.c.b16 %v744, %v743
    %777 = vmatprep.subr.bf16.mxu0 0
    %778 = vmatpush1.bf16.msra.mxu0 %v745
    %779 = vmatprep.subr.bf16.mxu0 0
    %780 = vmatpush1.bf16.msra.mxu0 %v746
    %781 = vmatprep.subr.bf16.mxu0 0
    %782 = vmatpush1.bf16.msra.mxu0 %v747
    %783 = vmatprep.subr.bf16.mxu0 0
    %784 = vmatpush1.bf16.msra.mxu0 %v748
    %785 = vmatprep.subr.bf16.mxu0 0
    %786 = vmatpush1.bf16.msra.mxu0 %v749
    %787 = vmatprep.subr.bf16.mxu0 0
    %788 = vmatpush1.bf16.msra.mxu0 %v750
    %789 = vmatprep.subr.bf16.mxu0 0
    %790 = vmatpush1.bf16.msra.mxu0 %v751
    %791 = vmatprep.subr.bf16.mxu0 0
    %792 = vmatpush1.bf16.msra.mxu0 %v752
    %793 = vmatprep.subr.bf16.mxu0 0
    %794 = vmatpush1.bf16.msra.mxu0 %v753
    %795 = vmatprep.subr.bf16.mxu0 0
    %796 = vmatpush1.bf16.msra.mxu0 %v754
    %797 = vmatprep.subr.bf16.mxu0 0
    %798 = vmatpush1.bf16.msra.mxu0 %v755
    %799 = vmatprep.subr.bf16.mxu0 0
    %800 = vmatpush1.bf16.msra.mxu0 %v756
    %801 = vmatprep.subr.bf16.mxu0 0
    %802 = vmatpush1.bf16.msra.mxu0 %v757
    %803 = vmatprep.subr.bf16.mxu0 0
    %804 = vmatpush1.bf16.msra.mxu0 %v758
    %805 = vmatprep.subr.bf16.mxu0 0
    %806 = vmatpush1.bf16.msra.mxu0 %v759
    %807 = vmatprep.subr.bf16.mxu0 0
    %808 = vmatpush1.bf16.msra.mxu0 %v760
    %809 = vmatprep.mubr.bf16.mxu0 %v296
    %810 = vmatmul.mubr.bf16.gmra.mrb[0].mxu0 %v295
    %v811 = vpop.f32.mrb[0].mxu0
    %v812 = vadd.f32 0.0, %v811
    %v813 = vpop.f32.mrb[0].mxu0
    %v814 = vpop.f32.mrb[0].mxu0
    %v815 = vadd.f32 0.0, %v814
    %v816 = vpop.f32.mrb[0].mxu0
    %817 = vmatprep.mubr.bf16.mxu0 %v298
    %818 = vmatmul.mubr.bf16.gmra.mrb[0].mxu0 %v297
    %v819 = vpop.f32.mrb[0].mxu0
    %v820 = vadd.f32 0.0, %v819
    %v821 = vpop.f32.mrb[0].mxu0
    %v822 = vpop.f32.mrb[0].mxu0
    %v823 = vadd.f32 0.0, %v822
    %v824 = vpop.f32.mrb[0].mxu0
    %825 = vmatprep.mubr.bf16.mxu0 %v300
    %826 = vmatmul.mubr.bf16.gmra.mrb[0].mxu0 %v299
    %v827 = vpop.f32.mrb[0].mxu0
    %v828 = vadd.f32 0.0, %v827
    %v829 = vpop.f32.mrb[0].mxu0
    %v830 = vpop.f32.mrb[0].mxu0
    %v831 = vadd.f32 0.0, %v830
    %v832 = vpop.f32.mrb[0].mxu0
    %833 = vmatprep.mubr.bf16.mxu0 %v302
    %834 = vmatmul.mubr.bf16.gmra.mrb[0].mxu0 %v301
    %v835 = vpop.f32.mrb[0].mxu0
    %v836 = vadd.f32 0.0, %v835
    %v837 = vpop.f32.mrb[0].mxu0
    %v838 = vpop.f32.mrb[0].mxu0
    %v839 = vadd.f32 0.0, %v838
    %v840 = vpop.f32.mrb[0].mxu0
    %841 = vmatprep.mubr.bf16.mxu0 %v304
    %842 = vmatmul.mubr.bf16.gmra.mrb[0].mxu0 %v303
    %v843 = vpop.f32.mrb[0].mxu0
    %v844 = vadd.f32 0.0, %v843
    %v845 = vpop.f32.mrb[0].mxu0
    %v846 = vpop.f32.mrb[0].mxu0
    %v847 = vadd.f32 0.0, %v846
    %v848 = vpop.f32.mrb[0].mxu0
    %849 = vmatprep.mubr.bf16.mxu0 %v306
    %850 = vmatmul.mubr.bf16.gmra.mrb[0].mxu0 %v305
    %v851 = vpop.f32.mrb[0].mxu0
    %v852 = vadd.f32 0.0, %v851
    %v853 = vpop.f32.mrb[0].mxu0
    %v854 = vpop.f32.mrb[0].mxu0
    %v855 = vadd.f32 0.0, %v854
    %v856 = vpop.f32.mrb[0].mxu0
    %857 = vmatprep.mubr.bf16.mxu0 %v308
    %858 = vmatmul.mubr.bf16.gmra.mrb[0].mxu0 %v307
    %v859 = vpop.f32.mrb[0].mxu0
    %v860 = vadd.f32 0.0, %v859
    %v861 = vpop.f32.mrb[0].mxu0
    %v862 = vpop.f32.mrb[0].mxu0
    %v863 = vadd.f32 0.0, %v862
    %v864 = vpop.f32.mrb[0].mxu0
    %865 = vmatprep.mubr.bf16.mxu0 %v310
    %866 = vmatmul.mubr.bf16.gmra.mrb[0].mxu0 %v309
    %v867 = vpop.f32.mrb[0].mxu0
    %v868 = vadd.f32 0.0, %v867
    %v869 = vpop.f32.mrb[0].mxu0
    %v870 = vpop.f32.mrb[0].mxu0
    %v871 = vadd.f32 0.0, %v870
    %v872 = vpop.f32.mrb[0].mxu0
    %873 = vdwg.mxu0
    %874 = vst.msk [vmem:[%s6] sm:$0xff] %vm632, %v812
    %875 = vst.msk [vmem:[%s6 + $0x8] sm:$0xff] %vm632, %v815
    %876 = vst.msk [vmem:[%s6 + $0x10] sm:$0xff] %vm632, %v820
    %877 = vst.msk [vmem:[%s6 + $0x18] sm:$0xff] %vm632, %v823
    %878 = vst.msk [vmem:[%s6 + $0x20] sm:$0xff] %vm632, %v828
    %879 = vst.msk [vmem:[%s6 + $0x28] sm:$0xff] %vm632, %v831
    %880 = vst.msk [vmem:[%s6 + $0x30] sm:$0xff] %vm632, %v836
    %881 = vst.msk [vmem:[%s6 + $0x38] sm:$0xff] %vm632, %v839
    %882 = vst.msk [vmem:[%s6 + $0x40] sm:$0xff] %vm632, %v844
    %883 = vst.msk [vmem:[%s6 + $0x48] sm:$0xff] %vm632, %v847
    %884 = vst.msk [vmem:[%s6 + $0x50] sm:$0xff] %vm632, %v852
    %885 = vst.msk [vmem:[%s6 + $0x58] sm:$0xff] %vm632, %v855
    %886 = vst.msk [vmem:[%s6 + $0x60] sm:$0xff] %vm632, %v860
    %887 = vst.msk [vmem:[%s6 + $0x68] sm:$0xff] %vm632, %v863
    %888 = vst.msk [vmem:[%s6 + $0x70] sm:$0xff] %vm632, %v868
    %889 = vst.msk [vmem:[%s6 + $0x78] sm:$0xff] %vm632, %v871
    // Predicated region
    $region18: #{tpu_custom_call.1} parent=1 // pred_check
      _
    $region19: #{tpu_custom_call.1} parent=1 // pred_check_branch
      %891 = sbr.rel (0) target = $region21
    $region20: #{tpu_custom_call.1} parent=1 // pred_region
      %s893 = ssub.s32 2048, 2048
      %894 = vsyncadd [#allocation3], %s893
      %s895 = sshll.u32 [#allocation2], 4
      %s896 = int_to_ptr.vmem [resolvable:$true] %s895
      %901 = dma.vmem_to_hbm [thread:$0]  %s896, 2048, %s4, [#allocation3], 128, 128, 8
    $region21: #{tpu_custom_call.1} parent=1 // pred_fallthru
      _
    // Predicated region
    $region22: #{tpu_custom_call.1} parent=1 // pred_check
      _
    $region23: #{tpu_custom_call.1} parent=1 // pred_check_branch
      %903 = sbr.rel (0) target = $region25
    $region24: #{tpu_custom_call.1} parent=1 // pred_region
      _
    $region25: #{tpu_custom_call.1} parent=1 // pred_fallthru
      _
    // Predicated region
    $region26: #{tpu_custom_call.1} parent=1 // pred_check
      _
    $region27: #{tpu_custom_call.1} parent=1 // pred_check_branch
      %905 = sbr.rel (0) target = $region29
    $region28: #{tpu_custom_call.1} parent=1 // pred_region
      _
    $region29: #{tpu_custom_call.1} parent=1 // pred_fallthru
      _
    // Predicated region
    $region30: #{tpu_custom_call.1} parent=1 // pred_check
      _
    $region31: #{tpu_custom_call.1} parent=1 // pred_check_branch
      %907 = sbr.rel (0) target = $region33
    $region32: #{tpu_custom_call.1} parent=1 // pred_region
      %908 = dma.done [#allocation3], 2048
    $region33: #{tpu_custom_call.1} parent=1 // pred_fallthru
      _
    // Predicated region
    $region34: #{tpu_custom_call.1} parent=1 // pred_check
      _
    $region35: #{tpu_custom_call.1} parent=1 // pred_check_branch
      %910 = sbr.rel (0) target = $region37
    $region36: #{tpu_custom_call.1} parent=1 // pred_region
      _
    $region37: #{tpu_custom_call.1} parent=1 // pred_fallthru
      _
    // Predicated region
    $region38: #{tpu_custom_call.1} parent=1 // pred_check
      _
    $region39: #{tpu_custom_call.1} parent=1 // pred_check_branch
      %912 = sbr.rel (0) target = $region41
    $region40: #{tpu_custom_call.1} parent=1 // pred_region
      _
    $region41: #{tpu_custom_call.1} parent=1 // pred_fallthru
      _
    %913 = vsyncpa [#allocation3], 1

// kernel: tpu_custom_call.1
$region0: #{tpu_custom_call.1}
  #allocation0 [shape = 'u32[]', space=smem, size = 0x4, offset = 0x4, fixed_abs, tag = 'smem constant byte address 0x4 - core index']
  #allocation1 [shape = 'u32[144,128]{1,0:T(1,128)}', space=vmem, size = 0x12000, scoped, tag = 'internal scratch']
  %s0 = inlined_call_operand.vmem [shape: bf16[128,128], index: 0, kind: input, shape index: {}]
  %s1 = inlined_call_operand.vmem [shape: bf16[128,256], index: 1, kind: input, shape index: {}]
  %s2 = inlined_call_operand.vmem [shape: bf16[256,2], index: 2, kind: input, shape index: {}]
  %s3 = inlined_call_operand.vmem [shape: bf16[256,2], index: 3, kind: input, shape index: {}]
  %s4 = inlined_call_operand.hbm [shape: bf16[128,256], index: 4, kind: output, shape index: {0}]
  %s5 = inlined_call_operand.vmem [shape: f32[128,2], index: 5, kind: output, shape index: {1}]
  %s6 = inlined_call_operand.vmem [shape: f32[128,2], index: 6, kind: output, shape index: {2}]
  %7 = xla_tuple %s4, %s5, %s6
  %s8 = sld [smem:[#allocation0]]
  $region42: #{tpu_custom_call.1} parent=0
    _
  %s10 = ssub.s32 1, %s8
  %s11 = scalar_select 0, %s10, %s8
  $region1: #{tpu_custom_call.1} parent=0
    #allocation2 [shape = 'u8[65536]{0}', space=vmem, size = 0x10000, scoped, tag = 'output window, operand 0, single buffered']
    #allocation3 [shape = 's32[1]{0}', space=sflag, size = 0x4, scoped, tag = 'scoped memory for tpu_custom_call.1']
    %12 = vsyncpa [#allocation3], 0
    // Predicated region
    $region2: #{tpu_custom_call.1} parent=1 // pred_check
      _
    $region3: #{tpu_custom_call.1} parent=1 // pred_check_branch
      %14 = sbr.rel (0) target = $region5
    $region4: #{tpu_custom_call.1} parent=1 // pred_region
      _
    $region5: #{tpu_custom_call.1} parent=1 // pred_fallthru
      _
    // Predicated region
    $region6: #{tpu_custom_call.1} parent=1 // pred_check
      _
    $region7: #{tpu_custom_call.1} parent=1 // pred_check_branch
      %16 = sbr.rel (0) target = $region9
    $region8: #{tpu_custom_call.1} parent=1 // pred_region
      _
    $region9: #{tpu_custom_call.1} parent=1 // pred_fallthru
      _
    // Predicated region
    $region10: #{tpu_custom_call.1} parent=1 // pred_check
      _
    $region11: #{tpu_custom_call.1} parent=1 // pred_check_branch
      %18 = sbr.rel (0) target = $region13
    $region12: #{tpu_custom_call.1} parent=1 // pred_region
      _
    $region13: #{tpu_custom_call.1} parent=1 // pred_fallthru
      _
    // Predicated region
    $region14: #{tpu_custom_call.1} parent=1 // pred_check
      _
    $region15: #{tpu_custom_call.1} parent=1 // pred_check_branch
      %20 = sbr.rel (0) target = $region17
    $region16: #{tpu_custom_call.1} parent=1 // pred_region
      _
    $region17: #{tpu_custom_call.1} parent=1 // pred_fallthru
      _
    %v22 = vld [vmem:[%s0] sm:$0xf]
    %v23 = vld [vmem:[%s0 + $0x4] sm:$0xf]
    %v24 = vld [vmem:[%s0 + $0x8] sm:$0xf]
    %v25 = vld [vmem:[%s0 + $0xc] sm:$0xf]
    %v26 = vld [vmem:[%s0 + $0x10] sm:$0xf]
    %v27 = vld [vmem:[%s0 + $0x14] sm:$0xf]
    %v28 = vld [vmem:[%s0 + $0x18] sm:$0xf]
    %v29 = vld [vmem:[%s0 + $0x1c] sm:$0xf]
    %v30 = vld [vmem:[%s0 + $0x20] sm:$0xf]
    %v31 = vld [vmem:[%s0 + $0x24] sm:$0xf]
    %v32 = vld [vmem:[%s0 + $0x28] sm:$0xf]
    %v33 = vld [vmem:[%s0 + $0x2c] sm:$0xf]
    %v34 = vld [vmem:[%s0 + $0x30] sm:$0xf]
    %v35 = vld [vmem:[%s0 + $0x34] sm:$0xf]
    %v36 = vld [vmem:[%s0 + $0x38] sm:$0xf]
    %v37 = vld [vmem:[%s0 + $0x3c] sm:$0xf]
    %v38 = vld [vmem:[%s1] sm:$0xff]
    %v39 = vld [vmem:[%s1 + $0x8] sm:$0xff]
    %v40 = vld [vmem:[%s1 + $0x10] sm:$0xff]
    %v41 = vld [vmem:[%s1 + $0x18] sm:$0xff]
    %v42 = vld [vmem:[%s1 + $0x20] sm:$0xff]
    %v43 = vld [vmem:[%s1 + $0x28] sm:$0xff]
    %v44 = vld [vmem:[%s1 + $0x30] sm:$0xff]
    %v45 = vld [vmem:[%s1 + $0x38] sm:$0xff]
    %v46 = vld [vmem:[%s1 + $0x40] sm:$0xff]
    %v47 = vld [vmem:[%s1 + $0x48] sm:$0xff]
    %v48 = vld [vmem:[%s1 + $0x50] sm:$0xff]
    %v49 = vld [vmem:[%s1 + $0x58] sm:$0xff]
    %v50 = vld [vmem:[%s1 + $0x60] sm:$0xff]
    %v51 = vld [vmem:[%s1 + $0x68] sm:$0xff]
    %v52 = vld [vmem:[%s1 + $0x70] sm:$0xff]
    %v53 = vld [vmem:[%s1 + $0x78] sm:$0xff]
    %v70 = vunpack.c.l.b16 %v22
    %v71 = vunpack.c.l.b16 %v23
    %v72 = vunpack.c.l.b16 %v24
    %v73 = vunpack.c.l.b16 %v25
    %v74 = vunpack.c.l.b16 %v26
    %v75 = vunpack.c.l.b16 %v27
    %v76 = vunpack.c.l.b16 %v28
    %v77 = vunpack.c.l.b16 %v29
    %v78 = vunpack.c.l.b16 %v30
    %v79 = vunpack.c.l.b16 %v31
    %v80 = vunpack.c.l.b16 %v32
    %v81 = vunpack.c.l.b16 %v33
    %v82 = vunpack.c.l.b16 %v34
    %v83 = vunpack.c.l.b16 %v35
    %v84 = vunpack.c.l.b16 %v36
    %v85 = vunpack.c.l.b16 %v37
    %v86 = vpack.c.b16 %v71, %v70
    %v87 = vpack.c.b16 %v73, %v72
    %v88 = vpack.c.b16 %v75, %v74
    %v89 = vpack.c.b16 %v77, %v76
    %v90 = vpack.c.b16 %v79, %v78
    %v91 = vpack.c.b16 %v81, %v80
    %v92 = vpack.c.b16 %v83, %v82
    %v93 = vpack.c.b16 %v85, %v84
    %v118 = vunpack.c.l.b16 %v38
    %v119 = vunpack.c.h.b16 %v38
    %v120 = vunpack.c.l.b16 %v39
    %v121 = vunpack.c.h.b16 %v39
    %v122 = vunpack.c.l.b16 %v40
    %v123 = vunpack.c.h.b16 %v40
    %v124 = vunpack.c.l.b16 %v41
    %v125 = vunpack.c.h.b16 %v41
    %v126 = vunpack.c.l.b16 %v42
    %v127 = vunpack.c.h.b16 %v42
    %v128 = vunpack.c.l.b16 %v43
    %v129 = vunpack.c.h.b16 %v43
    %v130 = vunpack.c.l.b16 %v44
    %v131 = vunpack.c.h.b16 %v44
    %v132 = vunpack.c.l.b16 %v45
    %v133 = vunpack.c.h.b16 %v45
    %v134 = vunpack.c.l.b16 %v46
    %v135 = vunpack.c.h.b16 %v46
    %v136 = vunpack.c.l.b16 %v47
    %v137 = vunpack.c.h.b16 %v47
    %v138 = vunpack.c.l.b16 %v48
    %v139 = vunpack.c.h.b16 %v48
    %v140 = vunpack.c.l.b16 %v49
    %v141 = vunpack.c.h.b16 %v49
    %v142 = vunpack.c.l.b16 %v50
    %v143 = vunpack.c.h.b16 %v50
    %v144 = vunpack.c.l.b16 %v51
    %v145 = vunpack.c.h.b16 %v51
    %v146 = vunpack.c.l.b16 %v52
    %v147 = vunpack.c.h.b16 %v52
    %v148 = vunpack.c.l.b16 %v53
    %v149 = vunpack.c.h.b16 %v53
    %v150 = vpack.c.b16 %v120, %v118
    %v151 = vpack.c.b16 %v121, %v119
    %v152 = vpack.c.b16 %v124, %v122
    %v153 = vpack.c.b16 %v125, %v123
    %v154 = vpack.c.b16 %v128, %v126
    %v155 = vpack.c.b16 %v129, %v127
    %v156 = vpack.c.b16 %v132, %v130
    %v157 = vpack.c.b16 %v133, %v131
    %v158 = vpack.c.b16 %v136, %v134
    %v159 = vpack.c.b16 %v137, %v135
    %v160 = vpack.c.b16 %v140, %v138
    %v161 = vpack.c.b16 %v141, %v139
    %v162 = vpack.c.b16 %v144, %v142
    %v163 = vpack.c.b16 %v145, %v143
    %v164 = vpack.c.b16 %v148, %v146
    %v165 = vpack.c.b16 %v149, %v147
    %182 = vmatprep.subr.bf16.mxu0 %v151
    %183 = vmatpush1.bf16.msra.mxu0 %v150
    %184 = vmatprep.subr.bf16.mxu0 %v153
    %185 = vmatpush1.bf16.msra.mxu0 %v152
    %186 = vmatprep.subr.bf16.mxu0 %v155
    %187 = vmatpush1.bf16.msra.mxu0 %v154
    %188 = vmatprep.subr.bf16.mxu0 %v157
    %189 = vmatpush1.bf16.msra.mxu0 %v156
    %190 = vmatprep.subr.bf16.mxu0 %v159
    %191 = vmatpush1.bf16.msra.mxu0 %v158
    %192 = vmatprep.subr.bf16.mxu0 %v161
    %193 = vmatpush1.bf16.msra.mxu0 %v160
    %194 = vmatprep.subr.bf16.mxu0 %v163
    %195 = vmatpush1.bf16.msra.mxu0 %v162
    %196 = vmatprep.subr.bf16.mxu0 %v165
    %197 = vmatpush1.bf16.msra.mxu0 %v164
    %198 = vmatprep.subr.bf16.mxu0 0
    %199 = vmatpush1.bf16.msra.mxu0 0
    %200 = vmatprep.subr.bf16.mxu0 0
    %201 = vmatpush1.bf16.msra.mxu0 0
    %202 = vmatprep.subr.bf16.mxu0 0
    %203 = vmatpush1.bf16.msra.mxu0 0
    %204 = vmatprep.subr.bf16.mxu0 0
    %205 = vmatpush1.bf16.msra.mxu0 0
    %206 = vmatprep.subr.bf16.mxu0 0
    %207 = vmatpush1.bf16.msra.mxu0 0
    %208 = vmatprep.subr.bf16.mxu0 0
    %209 = vmatpush1.bf16.msra.mxu0 0
    %210 = vmatprep.subr.bf16.mxu0 0
    %211 = vmatpush1.bf16.msra.mxu0 0
    %212 = vmatprep.subr.bf16.mxu0 0
    %213 = vmatpush1.bf16.msra.mxu0 0
    %214 = vmatprep.mubr.bf16.mxu0 0
    %215 = vmatmul.mubr.bf16.gmra.mrb[0].mxu0 %v86
    %v216 = vpop.f32.mrb[0].mxu0
    %v217 = vadd.f32 0.0, %v216
    %v218 = vpop.f32.mrb[0].mxu0
    %v219 = vadd.f32 0.0, %v218
    %v220 = vpop.f32.mrb[0].mxu0
    %v221 = vadd.f32 0.0, %v220
    %v222 = vpop.f32.mrb[0].mxu0
    %v223 = vadd.f32 0.0, %v222
    %224 = vmatprep.mubr.bf16.mxu0 0
    %225 = vmatmul.mubr.bf16.gmra.mrb[0].mxu0 %v87
    %v226 = vpop.f32.mrb[0].mxu0
    %v227 = vadd.f32 0.0, %v226
    %v228 = vpop.f32.mrb[0].mxu0
    %v229 = vadd.f32 0.0, %v228
    %v230 = vpop.f32.mrb[0].mxu0
    %v231 = vadd.f32 0.0, %v230
    %v232 = vpop.f32.mrb[0].mxu0
    %v233 = vadd.f32 0.0, %v232
    %234 = vmatprep.mubr.bf16.mxu0 0
    %235 = vmatmul.mubr.bf16.gmra.mrb[0].mxu0 %v88
    %v236 = vpop.f32.mrb[0].mxu0
    %v237 = vadd.f32 0.0, %v236
    %v238 = vpop.f32.mrb[0].mxu0
    %v239 = vadd.f32 0.0, %v238
    %v240 = vpop.f32.mrb[0].mxu0
    %v241 = vadd.f32 0.0, %v240
    %v242 = vpop.f32.mrb[0].mxu0
    %v243 = vadd.f32 0.0, %v242
    %244 = vmatprep.mubr.bf16.mxu0 0
    %245 = vmatmul.mubr.bf16.gmra.mrb[0].mxu0 %v89
    %v246 = vpop.f32.mrb[0].mxu0
    %v247 = vadd.f32 0.0, %v246
    %v248 = vpop.f32.mrb[0].mxu0
    %v249 = vadd.f32 0.0, %v248
    %v250 = vpop.f32.mrb[0].mxu0
    %v251 = vadd.f32 0.0, %v250
    %v252 = vpop.f32.mrb[0].mxu0
    %v253 = vadd.f32 0.0, %v252
    %254 = vmatprep.mubr.bf16.mxu0 0
    %255 = vmatmul.mubr.bf16.gmra.mrb[0].mxu0 %v90
    %v256 = vpop.f32.mrb[0].mxu0
    %v257 = vadd.f32 0.0, %v256
    %v258 = vpop.f32.mrb[0].mxu0
    %v259 = vadd.f32 0.0, %v258
    %v260 = vpop.f32.mrb[0].mxu0
    %v261 = vadd.f32 0.0, %v260
    %v262 = vpop.f32.mrb[0].mxu0
    %v263 = vadd.f32 0.0, %v262
    %264 = vmatprep.mubr.bf16.mxu0 0
    %265 = vmatmul.mubr.bf16.gmra.mrb[0].mxu0 %v91
    %v266 = vpop.f32.mrb[0].mxu0
    %v267 = vadd.f32 0.0, %v266
    %v268 = vpop.f32.mrb[0].mxu0
    %v269 = vadd.f32 0.0, %v268
    %v270 = vpop.f32.mrb[0].mxu0
    %v271 = vadd.f32 0.0, %v270
    %v272 = vpop.f32.mrb[0].mxu0
    %v273 = vadd.f32 0.0, %v272
    %274 = vmatprep.mubr.bf16.mxu0 0
    %275 = vmatmul.mubr.bf16.gmra.mrb[0].mxu0 %v92
    %v276 = vpop.f32.mrb[0].mxu0
    %v277 = vadd.f32 0.0, %v276
    %v278 = vpop.f32.mrb[0].mxu0
    %v279 = vadd.f32 0.0, %v278
    %v280 = vpop.f32.mrb[0].mxu0
    %v281 = vadd.f32 0.0, %v280
    %v282 = vpop.f32.mrb[0].mxu0
    %v283 = vadd.f32 0.0, %v282
    %284 = vmatprep.mubr.bf16.mxu0 0
    %285 = vmatmul.mubr.bf16.gmra.mrb[0].mxu0 %v93
    %v286 = vpop.f32.mrb[0].mxu0
    %v287 = vadd.f32 0.0, %v286
    %v288 = vpop.f32.mrb[0].mxu0
    %v289 = vadd.f32 0.0, %v288
    %v290 = vpop.f32.mrb[0].mxu0
    %v291 = vadd.f32 0.0, %v290
    %v292 = vpop.f32.mrb[0].mxu0
    %v293 = vadd.f32 0.0, %v292
    %294 = vdwg.mxu0
    %v295 = vpack.c.bf16 %v221, %v217
    %v296 = vpack.c.bf16 %v223, %v219
    %v297 = vpack.c.bf16 %v231, %v227
    %v298 = vpack.c.bf16 %v233, %v229
    %v299 = vpack.c.bf16 %v241, %v237
    %v300 = vpack.c.bf16 %v243, %v239
    %v301 = vpack.c.bf16 %v251, %v247
    %v302 = vpack.c.bf16 %v253, %v249
    %v303 = vpack.c.bf16 %v261, %v257
    %v304 = vpack.c.bf16 %v263, %v259
    %v305 = vpack.c.bf16 %v271, %v267
    %v306 = vpack.c.bf16 %v273, %v269
    %v307 = vpack.c.bf16 %v281, %v277
    %v308 = vpack.c.bf16 %v283, %v279
    %v309 = vpack.c.bf16 %v291, %v287
    %v310 = vpack.c.bf16 %v293, %v289
    %v327 = vunpack.c.l.b16 %v295
    %v328 = vunpack.c.l.b16 %v296
    %v329 = vunpack.c.h.b16 %v295
    %v330 = vunpack.c.h.b16 %v296
    %v331 = vunpack.c.l.b16 %v297
    %v332 = vunpack.c.l.b16 %v298
    %v333 = vunpack.c.h.b16 %v297
    %v334 = vunpack.c.h.b16 %v298
    %v335 = vunpack.c.l.b16 %v299
    %v336 = vunpack.c.l.b16 %v300
    %v337 = vunpack.c.h.b16 %v299
    %v338 = vunpack.c.h.b16 %v300
    %v339 = vunpack.c.l.b16 %v301
    %v340 = vunpack.c.l.b16 %v302
    %v341 = vunpack.c.h.b16 %v301
    %v342 = vunpack.c.h.b16 %v302
    %v343 = vunpack.c.l.b16 %v303
    %v344 = vunpack.c.l.b16 %v304
    %v345 = vunpack.c.h.b16 %v303
    %v346 = vunpack.c.h.b16 %v304
    %v347 = vunpack.c.l.b16 %v305
    %v348 = vunpack.c.l.b16 %v306
    %v349 = vunpack.c.h.b16 %v305
    %v350 = vunpack.c.h.b16 %v306
    %v351 = vunpack.c.l.b16 %v307
    %v352 = vunpack.c.l.b16 %v308
    %v353 = vunpack.c.h.b16 %v307
    %v354 = vunpack.c.h.b16 %v308
    %v355 = vunpack.c.l.b16 %v309
    %v356 = vunpack.c.l.b16 %v310
    %v357 = vunpack.c.h.b16 %v309
    %v358 = vunpack.c.h.b16 %v310
    %v359 = vpack.c.b16 %v328, %v327
    %v360 = vpack.c.b16 %v330, %v329
    %v361 = vpack.c.b16 %v332, %v331
    %v362 = vpack.c.b16 %v334, %v333
    %v363 = vpack.c.b16 %v336, %v335
    %v364 = vpack.c.b16 %v338, %v337
    %v365 = vpack.c.b16 %v340, %v339
    %v366 = vpack.c.b16 %v342, %v341
    %v367 = vpack.c.b16 %v344, %v343
    %v368 = vpack.c.b16 %v346, %v345
    %v369 = vpack.c.b16 %v348, %v347
    %v370 = vpack.c.b16 %v350, %v349
    %v371 = vpack.c.b16 %v352, %v351
    %v372 = vpack.c.b16 %v354, %v353
    %v373 = vpack.c.b16 %v356, %v355
    %v374 = vpack.c.b16 %v358, %v357
    %391 = vst [vmem:[#allocation2] sm:$0xff] %v359
    %392 = vst [vmem:[#allocation2 + $0x8] sm:$0xff] %v360
    %393 = vst [vmem:[#allocation2 + $0x10] sm:$0xff] %v361
    %394 = vst [vmem:[#allocation2 + $0x18] sm:$0xff] %v362
    %395 = vst [vmem:[#allocation2 + $0x20] sm:$0xff] %v363
    %396 = vst [vmem:[#allocation2 + $0x28] sm:$0xff] %v364
    %397 = vst [vmem:[#allocation2 + $0x30] sm:$0xff] %v365
    %398 = vst [vmem:[#allocation2 + $0x38] sm:$0xff] %v366
    %399 = vst [vmem:[#allocation2 + $0x40] sm:$0xff] %v367
    %400 = vst [vmem:[#allocation2 + $0x48] sm:$0xff] %v368
    %401 = vst [vmem:[#allocation2 + $0x50] sm:$0xff] %v369
    %402 = vst [vmem:[#allocation2 + $0x58] sm:$0xff] %v370
    %403 = vst [vmem:[#allocation2 + $0x60] sm:$0xff] %v371
    %404 = vst [vmem:[#allocation2 + $0x68] sm:$0xff] %v372
    %405 = vst [vmem:[#allocation2 + $0x70] sm:$0xff] %v373
    %406 = vst [vmem:[#allocation2 + $0x78] sm:$0xff] %v374
    %v407 = vld [vmem:[%s2] sm:$0xf]
    %v408 = vld [vmem:[%s2 + $0x4] sm:$0xf]
    %v409 = vld [vmem:[%s2 + $0x8] sm:$0xf]
    %v410 = vld [vmem:[%s2 + $0xc] sm:$0xf]
    %v411 = vld [vmem:[%s2 + $0x10] sm:$0xf]
    %v412 = vld [vmem:[%s2 + $0x14] sm:$0xf]
    %v413 = vld [vmem:[%s2 + $0x18] sm:$0xf]
    %v414 = vld [vmem:[%s2 + $0x1c] sm:$0xf]
    %v415 = vld [vmem:[%s2 + $0x20] sm:$0xf]
    %v416 = vld [vmem:[%s2 + $0x24] sm:$0xf]
    %v417 = vld [vmem:[%s2 + $0x28] sm:$0xf]
    %v418 = vld [vmem:[%s2 + $0x2c] sm:$0xf]
    %v419 = vld [vmem:[%s2 + $0x30] sm:$0xf]
    %v420 = vld [vmem:[%s2 + $0x34] sm:$0xf]
    %v421 = vld [vmem:[%s2 + $0x38] sm:$0xf]
    %v422 = vld [vmem:[%s2 + $0x3c] sm:$0xf]
    %v423 = vld [vmem:[%s2 + $0x40] sm:$0xf]
    %v424 = vld [vmem:[%s2 + $0x44] sm:$0xf]
    %v425 = vld [vmem:[%s2 + $0x48] sm:$0xf]
    %v426 = vld [vmem:[%s2 + $0x4c] sm:$0xf]
    %v427 = vld [vmem:[%s2 + $0x50] sm:$0xf]
    %v428 = vld [vmem:[%s2 + $0x54] sm:$0xf]
    %v429 = vld [vmem:[%s2 + $0x58] sm:$0xf]
    %v430 = vld [vmem:[%s2 + $0x5c] sm:$0xf]
    %v431 = vld [vmem:[%s2 + $0x60] sm:$0xf]
    %v432 = vld [vmem:[%s2 + $0x64] sm:$0xf]
    %v433 = vld [vmem:[%s2 + $0x68] sm:$0xf]
    %v434 = vld [vmem:[%s2 + $0x6c] sm:$0xf]
    %v435 = vld [vmem:[%s2 + $0x70] sm:$0xf]
    %v436 = vld [vmem:[%s2 + $0x74] sm:$0xf]
    %v437 = vld [vmem:[%s2 + $0x78] sm:$0xf]
    %v438 = vld [vmem:[%s2 + $0x7c] sm:$0xf]
    %v471 = vunpack.c.l.b16 %v407
    %v472 = vunpack.c.l.b16 %v408
    %v473 = vunpack.c.l.b16 %v409
    %v474 = vunpack.c.l.b16 %v410
    %v475 = vunpack.c.l.b16 %v411
    %v476 = vunpack.c.l.b16 %v412
    %v477 = vunpack.c.l.b16 %v413
    %v478 = vunpack.c.l.b16 %v414
    %v479 = vunpack.c.l.b16 %v415
    %v480 = vunpack.c.l.b16 %v416
    %v481 = vunpack.c.l.b16 %v417
    %v482 = vunpack.c.l.b16 %v418
    %v483 = vunpack.c.l.b16 %v419
    %v484 = vunpack.c.l.b16 %v420
    %v485 = vunpack.c.l.b16 %v421
    %v486 = vunpack.c.l.b16 %v422
    %v487 = vunpack.c.l.b16 %v423
    %v488 = vunpack.c.l.b16 %v424
    %v489 = vunpack.c.l.b16 %v425
    %v490 = vunpack.c.l.b16 %v426
    %v491 = vunpack.c.l.b16 %v427
    %v492 = vunpack.c.l.b16 %v428
    %v493 = vunpack.c.l.b16 %v429
    %v494 = vunpack.c.l.b16 %v430
    %v495 = vunpack.c.l.b16 %v431
    %v496 = vunpack.c.l.b16 %v432
    %v497 = vunpack.c.l.b16 %v433
    %v498 = vunpack.c.l.b16 %v434
    %v499 = vunpack.c.l.b16 %v435
    %v500 = vunpack.c.l.b16 %v436
    %v501 = vunpack.c.l.b16 %v437
    %v502 = vunpack.c.l.b16 %v438
    %v503 = vpack.c.b16 %v472, %v471
    %v504 = vpack.c.b16 %v474, %v473
    %v505 = vpack.c.b16 %v476, %v475
    %v506 = vpack.c.b16 %v478, %v477
    %v507 = vpack.c.b16 %v480, %v479
    %v508 = vpack.c.b16 %v482, %v481
    %v509 = vpack.c.b16 %v484, %v483
    %v510 = vpack.c.b16 %v486, %v485
    %v511 = vpack.c.b16 %v488, %v487
    %v512 = vpack.c.b16 %v490, %v489
    %v513 = vpack.c.b16 %v492, %v491
    %v514 = vpack.c.b16 %v494, %v493
    %v515 = vpack.c.b16 %v496, %v495
    %v516 = vpack.c.b16 %v498, %v497
    %v517 = vpack.c.b16 %v500, %v499
    %v518 = vpack.c.b16 %v502, %v501
    %535 = vmatprep.subr.bf16.mxu0 0
    %536 = vmatpush1.bf16.msra.mxu0 %v503
    %537 = vmatprep.subr.bf16.mxu0 0
    %538 = vmatpush1.bf16.msra.mxu0 %v504
    %539 = vmatprep.subr.bf16.mxu0 0
    %540 = vmatpush1.bf16.msra.mxu0 %v505
    %541 = vmatprep.subr.bf16.mxu0 0
    %542 = vmatpush1.bf16.msra.mxu0 %v506
    %543 = vmatprep.subr.bf16.mxu0 0
    %544 = vmatpush1.bf16.msra.mxu0 %v507
    %545 = vmatprep.subr.bf16.mxu0 0
    %546 = vmatpush1.bf16.msra.mxu0 %v508
    %547 = vmatprep.subr.bf16.mxu0 0
    %548 = vmatpush1.bf16.msra.mxu0 %v509
    %549 = vmatprep.subr.bf16.mxu0 0
    %550 = vmatpush1.bf16.msra.mxu0 %v510
    %551 = vmatprep.subr.bf16.mxu0 0
    %552 = vmatpush1.bf16.msra.mxu0 %v511
    %553 = vmatprep.subr.bf16.mxu0 0
    %554 = vmatpush1.bf16.msra.mxu0 %v512
    %555 = vmatprep.subr.bf16.mxu0 0
    %556 = vmatpush1.bf16.msra.mxu0 %v513
    %557 = vmatprep.subr.bf16.mxu0 0
    %558 = vmatpush1.bf16.msra.mxu0 %v514
    %559 = vmatprep.subr.bf16.mxu0 0
    %560 = vmatpush1.bf16.msra.mxu0 %v515
    %561 = vmatprep.subr.bf16.mxu0 0
    %562 = vmatpush1.bf16.msra.mxu0 %v516
    %563 = vmatprep.subr.bf16.mxu0 0
    %564 = vmatpush1.bf16.msra.mxu0 %v517
    %565 = vmatprep.subr.bf16.mxu0 0
    %566 = vmatpush1.bf16.msra.mxu0 %v518
    %567 = vmatprep.mubr.bf16.mxu0 %v296
    %568 = vmatmul.mubr.bf16.gmra.mrb[0].mxu0 %v295
    %v569 = vpop.f32.mrb[0].mxu0
    %v570 = vadd.f32 0.0, %v569
    %v571 = vpop.f32.mrb[0].mxu0
    %v572 = vpop.f32.mrb[0].mxu0
    %v573 = vadd.f32 0.0, %v572
    %v574 = vpop.f32.mrb[0].mxu0
    %575 = vmatprep.mubr.bf16.mxu0 %v298
    %576 = vmatmul.mubr.bf16.gmra.mrb[0].mxu0 %v297
    %v577 = vpop.f32.mrb[0].mxu0
    %v578 = vadd.f32 0.0, %v577
    %v579 = vpop.f32.mrb[0].mxu0
    %v580 = vpop.f32.mrb[0].mxu0
    %v581 = vadd.f32 0.0, %v580
    %v582 = vpop.f32.mrb[0].mxu0
    %583 = vmatprep.mubr.bf16.mxu0 %v300
    %584 = vmatmul.mubr.bf16.gmra.mrb[0].mxu0 %v299
    %v585 = vpop.f32.mrb[0].mxu0
    %v586 = vadd.f32 0.0, %v585
    %v587 = vpop.f32.mrb[0].mxu0
    %v588 = vpop.f32.mrb[0].mxu0
    %v589 = vadd.f32 0.0, %v588
    %v590 = vpop.f32.mrb[0].mxu0
    %591 = vmatprep.mubr.bf16.mxu0 %v302
    %592 = vmatmul.mubr.bf16.gmra.mrb[0].mxu0 %v301
    %v593 = vpop.f32.mrb[0].mxu0
    %v594 = vadd.f32 0.0, %v593
    %v595 = vpop.f32.mrb[0].mxu0
    %v596 = vpop.f32.mrb[0].mxu0
    %v597 = vadd.f32 0.0, %v596
    %v598 = vpop.f32.mrb[0].mxu0
    %599 = vmatprep.mubr.bf16.mxu0 %v304
    %600 = vmatmul.mubr.bf16.gmra.mrb[0].mxu0 %v303
    %v601 = vpop.f32.mrb[0].mxu0
    %v602 = vadd.f32 0.0, %v601
    %v603 = vpop.f32.mrb[0].mxu0
    %v604 = vpop.f32.mrb[0].mxu0
    %v605 = vadd.f32 0.0, %v604
    %v606 = vpop.f32.mrb[0].mxu0
    %607 = vmatprep.mubr.bf16.mxu0 %v306
    %608 = vmatmul.mubr.bf16.gmra.mrb[0].mxu0 %v305
    %v609 = vpop.f32.mrb[0].mxu0
    %v610 = vadd.f32 0.0, %v609
    %v611 = vpop.f32.mrb[0].mxu0
    %v612 = vpop.f32.mrb[0].mxu0
    %v613 = vadd.f32 0.0, %v612
    %v614 = vpop.f32.mrb[0].mxu0
    %615 = vmatprep.mubr.bf16.mxu0 %v308
    %616 = vmatmul.mubr.bf16.gmra.mrb[0].mxu0 %v307
    %v617 = vpop.f32.mrb[0].mxu0
    %v618 = vadd.f32 0.0, %v617
    %v619 = vpop.f32.mrb[0].mxu0
    %v620 = vpop.f32.mrb[0].mxu0
    %v621 = vadd.f32 0.0, %v620
    %v622 = vpop.f32.mrb[0].mxu0
    %623 = vmatprep.mubr.bf16.mxu0 %v310
    %624 = vmatmul.mubr.bf16.gmra.mrb[0].mxu0 %v309
    %v625 = vpop.f32.mrb[0].mxu0
    %v626 = vadd.f32 0.0, %v625
    %v627 = vpop.f32.mrb[0].mxu0
    %v628 = vpop.f32.mrb[0].mxu0
    %v629 = vadd.f32 0.0, %v628
    %v630 = vpop.f32.mrb[0].mxu0
    %631 = vdwg.mxu0
    %vm632 = vcmask 15360
    %633 = vst.msk [vmem:[%s5] sm:$0xff] %vm632, %v570
    %634 = vst.msk [vmem:[%s5 + $0x8] sm:$0xff] %vm632, %v573
    %635 = vst.msk [vmem:[%s5 + $0x10] sm:$0xff] %vm632, %v578
    %636 = vst.msk [vmem:[%s5 + $0x18] sm:$0xff] %vm632, %v581
    %637 = vst.msk [vmem:[%s5 + $0x20] sm:$0xff] %vm632, %v586
    %638 = vst.msk [vmem:[%s5 + $0x28] sm:$0xff] %vm632, %v589
    %639 = vst.msk [vmem:[%s5 + $0x30] sm:$0xff] %vm632, %v594
    %640 = vst.msk [vmem:[%s5 + $0x38] sm:$0xff] %vm632, %v597
    %641 = vst.msk [vmem:[%s5 + $0x40] sm:$0xff] %vm632, %v602
    %642 = vst.msk [vmem:[%s5 + $0x48] sm:$0xff] %vm632, %v605
    %643 = vst.msk [vmem:[%s5 + $0x50] sm:$0xff] %vm632, %v610
    %644 = vst.msk [vmem:[%s5 + $0x58] sm:$0xff] %vm632, %v613
    %645 = vst.msk [vmem:[%s5 + $0x60] sm:$0xff] %vm632, %v618
    %646 = vst.msk [vmem:[%s5 + $0x68] sm:$0xff] %vm632, %v621
    %647 = vst.msk [vmem:[%s5 + $0x70] sm:$0xff] %vm632, %v626
    %648 = vst.msk [vmem:[%s5 + $0x78] sm:$0xff] %vm632, %v629
    %v649 = vld [vmem:[%s3] sm:$0xf]
    %v650 = vld [vmem:[%s3 + $0x4] sm:$0xf]
    %v651 = vld [vmem:[%s3 + $0x8] sm:$0xf]
    %v652 = vld [vmem:[%s3 + $0xc] sm:$0xf]
    %v653 = vld [vmem:[%s3 + $0x10] sm:$0xf]
    %v654 = vld [vmem:[%s3 + $0x14] sm:$0xf]
    %v655 = vld [vmem:[%s3 + $0x18] sm:$0xf]
    %v656 = vld [vmem:[%s3 + $0x1c] sm:$0xf]
    %v657 = vld [vmem:[%s3 + $0x20] sm:$0xf]
    %v658 = vld [vmem:[%s3 + $0x24] sm:$0xf]
    %v659 = vld [vmem:[%s3 + $0x28] sm:$0xf]
    %v660 = vld [vmem:[%s3 + $0x2c] sm:$0xf]
    %v661 = vld [vmem:[%s3 + $0x30] sm:$0xf]
    %v662 = vld [vmem:[%s3 + $0x34] sm:$0xf]
    %v663 = vld [vmem:[%s3 + $0x38] sm:$0xf]
    %v664 = vld [vmem:[%s3 + $0x3c] sm:$0xf]
    %v665 = vld [vmem:[%s3 + $0x40] sm:$0xf]
    %v666 = vld [vmem:[%s3 + $0x44] sm:$0xf]
    %v667 = vld [vmem:[%s3 + $0x48] sm:$0xf]
    %v668 = vld [vmem:[%s3 + $0x4c] sm:$0xf]
    %v669 = vld [vmem:[%s3 + $0x50] sm:$0xf]
    %v670 = vld [vmem:[%s3 + $0x54] sm:$0xf]
    %v671 = vld [vmem:[%s3 + $0x58] sm:$0xf]
    %v672 = vld [vmem:[%s3 + $0x5c] sm:$0xf]
    %v673 = vld [vmem:[%s3 + $0x60] sm:$0xf]
    %v674 = vld [vmem:[%s3 + $0x64] sm:$0xf]
    %v675 = vld [vmem:[%s3 + $0x68] sm:$0xf]
    %v676 = vld [vmem:[%s3 + $0x6c] sm:$0xf]
    %v677 = vld [vmem:[%s3 + $0x70] sm:$0xf]
    %v678 = vld [vmem:[%s3 + $0x74] sm:$0xf]
    %v679 = vld [vmem:[%s3 + $0x78] sm:$0xf]
    %v680 = vld [vmem:[%s3 + $0x7c] sm:$0xf]
    %v713 = vunpack.c.l.b16 %v649
    %v714 = vunpack.c.l.b16 %v650
    %v715 = vunpack.c.l.b16 %v651
    %v716 = vunpack.c.l.b16 %v652
    %v717 = vunpack.c.l.b16 %v653
    %v718 = vunpack.c.l.b16 %v654
    %v719 = vunpack.c.l.b16 %v655
    %v720 = vunpack.c.l.b16 %v656
    %v721 = vunpack.c.l.b16 %v657
    %v722 = vunpack.c.l.b16 %v658
    %v723 = vunpack.c.l.b16 %v659
    %v724 = vunpack.c.l.b16 %v660
    %v725 = vunpack.c.l.b16 %v661
    %v726 = vunpack.c.l.b16 %v662
    %v727 = vunpack.c.l.b16 %v663
    %v728 = vunpack.c.l.b16 %v664
    %v729 = vunpack.c.l.b16 %v665
    %v730 = vunpack.c.l.b16 %v666
    %v731 = vunpack.c.l.b16 %v667
    %v732 = vunpack.c.l.b16 %v668
    %v733 = vunpack.c.l.b16 %v669
    %v734 = vunpack.c.l.b16 %v670
    %v735 = vunpack.c.l.b16 %v671
    %v736 = vunpack.c.l.b16 %v672
    %v737 = vunpack.c.l.b16 %v673
    %v738 = vunpack.c.l.b16 %v674
    %v739 = vunpack.c.l.b16 %v675
    %v740 = vunpack.c.l.b16 %v676
    %v741 = vunpack.c.l.b16 %v677
    %v742 = vunpack.c.l.b16 %v678
    %v743 = vunpack.c.l.b16 %v679
    %v744 = vunpack.c.l.b16 %v680
    %v745 = vpack.c.b16 %v714, %v713
    %v746 = vpack.c.b16 %v716, %v715
    %v747 = vpack.c.b16 %v718, %v717
    %v748 = vpack.c.b16 %v720, %v719
    %v749 = vpack.c.b16 %v722, %v721
    %v750 = vpack.c.b16 %v724, %v723
    %v751 = vpack.c.b16 %v726, %v725
    %v752 = vpack.c.b16 %v728, %v727
    %v753 = vpack.c.b16 %v730, %v729
    %v754 = vpack.c.b16 %v732, %v731
    %v755 = vpack.c.b16 %v734, %v733
    %v756 = vpack.c.b16 %v736, %v735
    %v757 = vpack.c.b16 %v738, %v737
    %v758 = vpack.c.b16 %v740, %v739
    %v759 = vpack.c.b16 %v742, %v741
    %v760 = vpack.c.b16 %v744, %v743
    %777 = vmatprep.subr.bf16.mxu0 0
    %778 = vmatpush1.bf16.msra.mxu0 %v745
    %779 = vmatprep.subr.bf16.mxu0 0
    %780 = vmatpush1.bf16.msra.mxu0 %v746
    %781 = vmatprep.subr.bf16.mxu0 0
    %782 = vmatpush1.bf16.msra.mxu0 %v747
    %783 = vmatprep.subr.bf16.mxu0 0
    %784 = vmatpush1.bf16.msra.mxu0 %v748
    %785 = vmatprep.subr.bf16.mxu0 0
    %786 = vmatpush1.bf16.msra.mxu0 %v749
    %787 = vmatprep.subr.bf16.mxu0 0
    %788 = vmatpush1.bf16.msra.mxu0 %v750
    %789 = vmatprep.subr.bf16.mxu0 0
    %790 = vmatpush1.bf16.msra.mxu0 %v751
    %791 = vmatprep.subr.bf16.mxu0 0
    %792 = vmatpush1.bf16.msra.mxu0 %v752
    %793 = vmatprep.subr.bf16.mxu0 0
    %794 = vmatpush1.bf16.msra.mxu0 %v753
    %795 = vmatprep.subr.bf16.mxu0 0
    %796 = vmatpush1.bf16.msra.mxu0 %v754
    %797 = vmatprep.subr.bf16.mxu0 0
    %798 = vmatpush1.bf16.msra.mxu0 %v755
    %799 = vmatprep.subr.bf16.mxu0 0
    %800 = vmatpush1.bf16.msra.mxu0 %v756
    %801 = vmatprep.subr.bf16.mxu0 0
    %802 = vmatpush1.bf16.msra.mxu0 %v757
    %803 = vmatprep.subr.bf16.mxu0 0
    %804 = vmatpush1.bf16.msra.mxu0 %v758
    %805 = vmatprep.subr.bf16.mxu0 0
    %806 = vmatpush1.bf16.msra.mxu0 %v759
    %807 = vmatprep.subr.bf16.mxu0 0
    %808 = vmatpush1.bf16.msra.mxu0 %v760
    %809 = vmatprep.mubr.bf16.mxu0 %v296
    %810 = vmatmul.mubr.bf16.gmra.mrb[0].mxu0 %v295
    %v811 = vpop.f32.mrb[0].mxu0
    %v812 = vadd.f32 0.0, %v811
    %v813 = vpop.f32.mrb[0].mxu0
    %v814 = vpop.f32.mrb[0].mxu0
    %v815 = vadd.f32 0.0, %v814
    %v816 = vpop.f32.mrb[0].mxu0
    %817 = vmatprep.mubr.bf16.mxu0 %v298
    %818 = vmatmul.mubr.bf16.gmra.mrb[0].mxu0 %v297
    %v819 = vpop.f32.mrb[0].mxu0
    %v820 = vadd.f32 0.0, %v819
    %v821 = vpop.f32.mrb[0].mxu0
    %v822 = vpop.f32.mrb[0].mxu0
    %v823 = vadd.f32 0.0, %v822
    %v824 = vpop.f32.mrb[0].mxu0
    %825 = vmatprep.mubr.bf16.mxu0 %v300
    %826 = vmatmul.mubr.bf16.gmra.mrb[0].mxu0 %v299
    %v827 = vpop.f32.mrb[0].mxu0
    %v828 = vadd.f32 0.0, %v827
    %v829 = vpop.f32.mrb[0].mxu0
    %v830 = vpop.f32.mrb[0].mxu0
    %v831 = vadd.f32 0.0, %v830
    %v832 = vpop.f32.mrb[0].mxu0
    %833 = vmatprep.mubr.bf16.mxu0 %v302
    %834 = vmatmul.mubr.bf16.gmra.mrb[0].mxu0 %v301
    %v835 = vpop.f32.mrb[0].mxu0
    %v836 = vadd.f32 0.0, %v835
    %v837 = vpop.f32.mrb[0].mxu0
    %v838 = vpop.f32.mrb[0].mxu0
    %v839 = vadd.f32 0.0, %v838
    %v840 = vpop.f32.mrb[0].mxu0
    %841 = vmatprep.mubr.bf16.mxu0 %v304
    %842 = vmatmul.mubr.bf16.gmra.mrb[0].mxu0 %v303
    %v843 = vpop.f32.mrb[0].mxu0
    %v844 = vadd.f32 0.0, %v843
    %v845 = vpop.f32.mrb[0].mxu0
    %v846 = vpop.f32.mrb[0].mxu0
    %v847 = vadd.f32 0.0, %v846
    %v848 = vpop.f32.mrb[0].mxu0
    %849 = vmatprep.mubr.bf16.mxu0 %v306
    %850 = vmatmul.mubr.bf16.gmra.mrb[0].mxu0 %v305
    %v851 = vpop.f32.mrb[0].mxu0
    %v852 = vadd.f32 0.0, %v851
    %v853 = vpop.f32.mrb[0].mxu0
    %v854 = vpop.f32.mrb[0].mxu0
    %v855 = vadd.f32 0.0, %v854
    %v856 = vpop.f32.mrb[0].mxu0
    %857 = vmatprep.mubr.bf16.mxu0 %v308
    %858 = vmatmul.mubr.bf16.gmra.mrb[0].mxu0 %v307
    %v859 = vpop.f32.mrb[0].mxu0
    %v860 = vadd.f32 0.0, %v859
    %v861 = vpop.f32.mrb[0].mxu0
    %v862 = vpop.f32.mrb[0].mxu0
    %v863 = vadd.f32 0.0, %v862
    %v864 = vpop.f32.mrb[0].mxu0
    %865 = vmatprep.mubr.bf16.mxu0 %v310
    %866 = vmatmul.mubr.bf16.gmra.mrb[0].mxu0 %v309
    %v867 = vpop.f32.mrb[0].mxu0
    %v868 = vadd.f32 0.0, %v867
    %v869 = vpop.f32.mrb[0].mxu0
    %v870 = vpop.f32.mrb[0].mxu0
    %v871 = vadd.f32 0.0, %v870
    %v872 = vpop.f32.mrb[0].mxu0
    %873 = vdwg.mxu0
    %874 = vst.msk [vmem:[%s6] sm:$0xff] %vm632, %v812
    %875 = vst.msk [vmem:[%s6 + $0x8] sm:$0xff] %vm632, %v815
    %876 = vst.msk [vmem:[%s6 + $0x10] sm:$0xff] %vm632, %v820
    %877 = vst.msk [vmem:[%s6 + $0x18] sm:$0xff] %vm632, %v823
    %878 = vst.msk [vmem:[%s6 + $0x20] sm:$0xff] %vm632, %v828
    %879 = vst.msk [vmem:[%s6 + $0x28] sm:$0xff] %vm632, %v831
    %880 = vst.msk [vmem:[%s6 + $0x30] sm:$0xff] %vm632, %v836
    %881 = vst.msk [vmem:[%s6 + $0x38] sm:$0xff] %vm632, %v839
    %882 = vst.msk [vmem:[%s6 + $0x40] sm:$0xff] %vm632, %v844
    %883 = vst.msk [vmem:[%s6 + $0x48] sm:$0xff] %vm632, %v847
    %884 = vst.msk [vmem:[%s6 + $0x50] sm:$0xff] %vm632, %v852
    %885 = vst.msk [vmem:[%s6 + $0x58] sm:$0xff] %vm632, %v855
    %886 = vst.msk [vmem:[%s6 + $0x60] sm:$0xff] %vm632, %v860
    %887 = vst.msk [vmem:[%s6 + $0x68] sm:$0xff] %vm632, %v863
    %888 = vst.msk [vmem:[%s6 + $0x70] sm:$0xff] %vm632, %v868
    %889 = vst.msk [vmem:[%s6 + $0x78] sm:$0xff] %vm632, %v871
    // Predicated region
    $region18: #{tpu_custom_call.1} parent=1 // pred_check
      _
    $region19: #{tpu_custom_call.1} parent=1 // pred_check_branch
      %891 = sbr.rel (0) target = $region21
    $region20: #{tpu_custom_call.1} parent=1 // pred_region
      %s893 = ssub.s32 2048, 2048
      %894 = vsyncadd [#allocation3], %s893
      %s895 = sshll.u32 [#allocation2], 4
      %s896 = int_to_ptr.vmem [resolvable:$true] %s895
      %901 = dma.vmem_to_hbm [thread:$0]  %s896, 2048, %s4, [#allocation3], 128, 128, 8
    $region21: #{tpu_custom_call.1} parent=1 // pred_fallthru
      _
    // Predicated region
    $region22: #{tpu_custom_call.1} parent=1 // pred_check
      _
    $region23: #{tpu_custom_call.1} parent=1 // pred_check_branch
      %903 = sbr.rel (0) target = $region25
    $region24: #{tpu_custom_call.1} parent=1 // pred_region
      _
    $region25: #{tpu_custom_call.1} parent=1 // pred_fallthru
      _
    // Predicated region
    $region26: #{tpu_custom_call.1} parent=1 // pred_check
      _
    $region27: #{tpu_custom_call.1} parent=1 // pred_check_branch
      %905 = sbr.rel (0) target = $region29
    $region28: #{tpu_custom_call.1} parent=1 // pred_region
      _
    $region29: #{tpu_custom_call.1} parent=1 // pred_fallthru
      _
    // Predicated region
    $region30: #{tpu_custom_call.1} parent=1 // pred_check
      _
    $region31: #{tpu_custom_call.1} parent=1 // pred_check_branch
      %907 = sbr.rel (0) target = $region33
    $region32: #{tpu_custom_call.1} parent=1 // pred_region
      %908 = dma.done [#allocation3], 2048
    $region33: #{tpu_custom_call.1} parent=1 // pred_fallthru
      _
    // Predicated region
    $region34: #{tpu_custom_call.1} parent=1 // pred_check
      _
    $region35: #{tpu_custom_call.1} parent=1 // pred_check_branch
      %910 = sbr.rel (0) target = $region37
    $region36: #{tpu_custom_call.1} parent=1 // pred_region
      _
    $region37: #{tpu_custom_call.1} parent=1 // pred_fallthru
      _
    // Predicated region
    $region38: #{tpu_custom_call.1} parent=1 // pred_check
      _
    $region39: #{tpu_custom_call.1} parent=1 // pred_check_branch
      %912 = sbr.rel (0) target = $region41
    $region40: #{tpu_custom_call.1} parent=1 // pred_region
      _
    $region41: #{tpu_custom_call.1} parent=1 // pred_fallthru
      _
    %913 = vsyncpa [#allocation3], 1

</llo_original>
